<compile_context>
chip_gen: v7x
topology: tpu7x:2x2x1
jax: 0.10.0
libtpu: 0.0.40
codegen_flags: <defaults>
</compile_context>

<pallas_src>
import jax
import jax.numpy as jnp
from jax.experimental import pallas as pl
from jax.experimental.pallas import tpu as pltpu


def _round_up(x, m):
    return -(-x // m) * m


# ---------------------------------------------------------------------------
# Fused kernel (one grid step == TB batch elements)
# ---------------------------------------------------------------------------
def make_graphnet_kernel(T, L, dims, TB, sp_off, featr_off, bd_meta):
    f32 = jnp.float32

    def kernel(ts_ref, f0_ref, fr_ref, sp_ref, bd_ref, out_ref):
        # ts_ref (SMEM, f32[3]): [theta_test1_for, theta_test1_back, theta5_bias]
        t1_for = ts_ref[0]
        t1_back = ts_ref[1]
        b5 = ts_ref[2]

        def sp(name):                       # static slice of the (p, Wp) slab
            off, w = sp_off[name]
            return sp_ref[:, off:off + w]

        def bd_dot(x, name):                # x @ block-diagonal slab piece
            rows, c0, wpad, wtrue = bd_meta[name]
            r = jnp.dot(x, bd_ref[:rows, c0:c0 + wpad],
                        preferred_element_type=f32)
            return r if wtrue == wpad else r[:, :wtrue]

        def mlp(x, prefix):                 # relu(W @ h + b) chain along p
            h = x
            for t in range(T):
                h = jnp.maximum(
                    jnp.dot(sp(f"{prefix}W{t}"), h,
                            preferred_element_type=f32)
                    + sp(f"{prefix}B{t}"), 0.0)
            return h

        # ---- Stage 1: per-level embedding MLPs, layout (p, TB*n_k) ----
        mu = [None] * L
        mu[0] = mlp(f0_ref[0], "in")                      # (p, TB*n0)
        hr = mlp(fr_ref[0], "r")                          # levels 1..L-1 batched
        for k in range(1, L):
            o = featr_off[k]                              # 128-aligned offsets
            mu[k] = hr[:, o:o + TB * dims[k]]

        wt1, wt2 = sp("wt1"), sp("wt2")
        wt3, wt4 = sp("wt3"), sp("wt4")

        # ---- Stage 2: forward message passing (Linear branch) ----
        for rho in range(L - 1):
            mu_prev = mu[rho]                             # (p, TB*n_in)
            fwd = bd_dot(mu_prev, f"Af{rho}")             # mu @ kron(I, W^T)
            smf = bd_dot(mu_prev, f"Sf{rho}")             # row-sum/n_out, bcast
            acc = (t1_for * mu[rho + 1]
                   + jnp.dot(wt2, fwd, preferred_element_type=f32)
                   + jnp.dot(wt1, smf, preferred_element_type=f32)
                   + sp(f"Cf{rho}"))                      # folded biases
            mu[rho + 1] = jnp.maximum(acc, 0.0)

        # ---- Stage 3: backward message passing (Linear branch) ----
        for rho in range(L - 1, 0, -1):
            mu_prev = mu[rho]                             # (p, TB*n_cur)
            back = bd_dot(mu_prev, f"Ab{rho}")            # mu @ kron(I, W)
            smb = bd_dot(mu_prev, f"Sb{rho}")             # row-sum/n_prev, bcast
            acc = (t1_back * mu[rho - 1]
                   + jnp.dot(wt4, back, preferred_element_type=f32)
                   + jnp.dot(wt3, smb, preferred_element_type=f32)
                   + sp(f"Cb{rho}"))                      # folded (-b@W), biases
            mu[rho - 1] = jnp.maximum(acc, 0.0)

        # ---- Stage 4: final score (theta5 contracted along p) ----
        score = jnp.sum(sp("w5") * mu[0], axis=0, keepdims=True) + b5  # (1, TB*n0)
        out_ref[0] = score

    return kernel


# ---------------------------------------------------------------------------
# Parameters (deterministic synthetic init)
# ---------------------------------------------------------------------------
def init_params(key, T, p, dims):
    def lin(k, n_in, n_out, scale=0.3):
        k1, k2 = jax.random.split(k)
        W = jax.random.normal(k1, (n_out, n_in), jnp.float32) * scale
        b = jax.random.normal(k2, (n_out,), jnp.float32) * scale
        return (W, b)

    keys = iter(jax.random.split(key, 32))
    params = {
        'p': p,
        'thetas_input': [lin(next(keys), 3, p)] + [lin(next(keys), p, p) for _ in range(T - 1)],
        'thetas':       [lin(next(keys), 3, p)] + [lin(next(keys), p, p) for _ in range(T - 1)],
        'theta_temp':   [lin(next(keys), p, p) for _ in range(4)],
        'theta5':       lin(next(keys), p, 1),
        't_for':        jax.random.uniform(next(keys), (3,), jnp.float32),   # theta_test{1,2,3}_for
        't_back':       jax.random.uniform(next(keys), (3,), jnp.float32),   # theta_test{1,2,3}_back
        'layer_wbs':    [lin(next(keys), dims[i], dims[i + 1]) for i in range(len(dims) - 1)],
    }
    return params


# ---------------------------------------------------------------------------
# GraphNet forward (single fused, batch-tiled Pallas call)
# ---------------------------------------------------------------------------
def graphnet_forward_pallas(params, image, lbs, ubs, rhos_prev, TB=8):
    f32 = jnp.float32
    p = params['p']
    T = len(params['thetas'])
    L = len(lbs)
    dims = tuple(int(x.shape[1]) for x in lbs)
    n0 = dims[0]
    B = int(image.shape[0])
    G = -(-B // TB)
    B_pad = G * TB

    def pad_b(x):
        return x if B_pad == B else jnp.pad(x, ((0, B_pad - B), (0, 0)))

    def flat_level(chs):
        # chs: 3 arrays (B, n_k) -> (G, 3, TB*n_k), lane index = b_local*n_k + node
        st = jnp.stack([pad_b(c.astype(f32)) for c in chs], axis=1)   # (B_pad, 3, n_k)
        nk = st.shape[-1]
        return (st.reshape(G, TB, 3, nk)
                  .transpose(0, 2, 1, 3)
                  .reshape(G, 3, TB * nk))

    # ---- features (batch-tiled, lane-flattened) ----
    feat0 = flat_level([image, lbs[0], ubs[0]])                       # (G, 3, TB*n0)
    featr_parts, featr_off, cur = [], {}, 0
    for k in range(1, L):
        rho_prev = jnp.zeros_like(ubs[k]) if k == L - 1 else rhos_prev[k - 1][:, 0]
        blk = flat_level([lbs[k], ubs[k], rho_prev])                  # (G, 3, TB*n_k)
        w = blk.shape[-1]
        wpad = _round_up(w, 128)                                      # keep level slices 128-aligned
        if wpad != w:
            blk = jnp.pad(blk, ((0, 0), (0, 0), (0, wpad - w)))
        featr_off[k] = cur
        cur += wpad
        featr_parts.append(blk)
    featr = jnp.concatenate(featr_parts, axis=-1)                     # (G, 3, Wr)

    # ---- fold theta_test{2,3}_{for,back} into theta_temp weights ----
    t1f, t2f, t3f = params['t_for']
    t1b, t2b, t3b = params['t_back']
    (T1W, T1b_), (T2W, T2b_), (T3W, T3b_), (T4W, T4b_) = params['theta_temp']
    wt1, bt1 = t3f * T1W, t3f * T1b_
    wt2, bt2 = t2f * T2W, t2f * T2b_
    wt3, bt3 = t3b * T3W, t3b * T3b_
    wt4, bt4 = t2b * T4W, t2b * T4b_

    # ---- slab of all p-row weights / precomputed constants ----
    sp_pieces, sp_off = [], {}

    def addp(name, arr):
        arr = arr.astype(f32)
        off = sum(a.shape[1] for a in sp_pieces)
        sp_off[name] = (off, int(arr.shape[1]))
        sp_pieces.append(arr)

    for t, (W, b) in enumerate(params['thetas_input']):
        addp(f"inW{t}", W)
        addp(f"inB{t}", b.reshape(p, 1))
    for t, (W, b) in enumerate(params['thetas']):
        addp(f"rW{t}", W)
        addp(f"rB{t}", b.reshape(p, 1))
    addp("wt1", wt1)
    addp("wt2", wt2)
    addp("wt3", wt3)
    addp("wt4", wt4)
    rs_wt2 = jnp.sum(wt2, axis=1, keepdims=True)                      # (p, 1)
    rs_wt4 = jnp.sum(wt4, axis=1, keepdims=True)
    for rho in range(L - 1):                                          # forward constants
        Wl, bl = params['layer_wbs'][rho]                             # (n_out, n_in), (n_out,)
        addp(f"Cf{rho}",
             rs_wt2 * jnp.tile(bl, TB)[None, :] + (bt2 + bt1).reshape(p, 1))
    for rho in range(1, L):                                           # backward constants
        Wl, bl = params['layer_wbs'][rho - 1]                         # (n_cur, n_prev), (n_cur,)
        n_prev = dims[rho - 1]
        addp(f"Cb{rho}",
             -rs_wt4 * jnp.tile(bl @ Wl, TB)[None, :]
             + (bt4 + bt3 / n_prev).reshape(p, 1))
    w5, b5 = params['theta5']                                         # (1, p), (1,)
    addp("w5", w5.reshape(p, 1))
    slab_p = jnp.concatenate(sp_pieces, axis=1)                       # (p, Wp)

    # ---- block-diagonal (batch-expanded) layer matrices, row-sum folded ----
    Rmax = TB * max(dims)
    bd_pieces, bd_meta = [], {}
    eye_tb = jnp.eye(TB, dtype=f32)

    def addbd(name, M):
        M = M.astype(f32)
        rows, cols = int(M.shape[0]), int(M.shape[1])
        wpad = _round_up(cols, 128)                                   # 128-aligned columns
        Mp = jnp.zeros((Rmax, wpad), f32).at[:rows, :cols].set(M)
        off = sum(a.shape[1] for a in bd_pieces)
        bd_meta[name] = (rows, off, wpad, cols)
        bd_pieces.append(Mp)

    for rho in range(L - 1):
        Wl, _ = params['layer_wbs'][rho]                              # (n_out, n_in)
        n_in, n_out = dims[rho], dims[rho + 1]
        addbd(f"Af{rho}", jnp.kron(eye_tb, Wl.T))
        addbd(f"Sf{rho}", jnp.kron(eye_tb, jnp.full((n_in, n_out), 1.0 / n_out, f32)))
    for rho in range(1, L):
        Wl, _ = params['layer_wbs'][rho - 1]                          # (n_cur, n_prev)
        n_cur, n_prev = dims[rho], dims[rho - 1]
        addbd(f"Ab{rho}", jnp.kron(eye_tb, Wl))
        addbd(f"Sb{rho}", jnp.kron(eye_tb, jnp.full((n_cur, n_prev), 1.0 / n_prev, f32)))
    slab_bd = jnp.concatenate(bd_pieces, axis=1)                      # (Rmax, Wbd)

    ts = jnp.stack([t1f, t1b, b5[0]]).astype(f32)                     # scalar prefetch

    Wr = int(featr.shape[-1])
    Wp = int(slab_p.shape[1])
    Rbd, Wbd = int(slab_bd.shape[0]), int(slab_bd.shape[1])

    kernel = make_graphnet_kernel(T, L, dims, TB, sp_off, featr_off, bd_meta)

    out = pl.pallas_call(
        kernel,
        out_shape=jax.ShapeDtypeStruct((G, 1, TB * n0), f32),
        grid_spec=pltpu.PrefetchScalarGridSpec(
            num_scalar_prefetch=1,
            grid=(G,),
            in_specs=[
                pl.BlockSpec((1, 3, TB * n0), lambda i, s: (i, 0, 0)),
                pl.BlockSpec((1, 3, Wr), lambda i, s: (i, 0, 0)),
                pl.BlockSpec((p, Wp), lambda i, s: (0, 0)),       # grid-invariant slab
                pl.BlockSpec((Rbd, Wbd), lambda i, s: (0, 0)),    # grid-invariant slab
            ],
            out_specs=pl.BlockSpec((1, 1, TB * n0), lambda i, s: (i, 0, 0)),
        ),
        compiler_params=pltpu.CompilerParams(
            dimension_semantics=("parallel",)),
    )(ts, feat0, featr, slab_p, slab_bd)

    return out.reshape(B_pad, n0)[:B]


# ---------------------------------------------------------------------------
# Pure-JAX reference (mirrors the PyTorch semantics) — sanity check
# ---------------------------------------------------------------------------
def graphnet_forward_ref(params, image, lbs, ubs, rhos_prev):
    L = len(lbs)

    def lin(Wb, x):
        W, b = Wb
        return x @ W.T + b

    def along_p(Wb, x):   # modified_forward: Linear applied along axis 0
        return jnp.moveaxis(lin(Wb, jnp.moveaxis(x, 0, -1)), -1, 0)

    mu = []
    for k in range(L):
        if k == 0:
            feat = jnp.stack([image, lbs[0], ubs[0]], -1)
            chain = params['thetas_input']
        else:
            rho_prev = jnp.zeros_like(ubs[k]) if k == L - 1 else rhos_prev[k - 1][:, 0]
            feat = jnp.stack([lbs[k], ubs[k], rho_prev], -1)
            chain = params['thetas']
        h = feat
        for Wb in chain:
            h = jax.nn.relu(lin(Wb, h))
        mu.append(jnp.moveaxis(h, -1, 0))            # (p, B, n_k)

    t1f, t2f, t3f = params['t_for']
    t1b_, t2b_, t3b_ = params['t_back']
    T1, T2, T3, T4 = params['theta_temp']

    for rho_idx in range(L - 1):
        W, b = params['layer_wbs'][rho_idx]
        mu_prev = mu[rho_idx]
        sum_mu = mu_prev.sum(-1) / W.shape[0]
        embed_sum = along_p(T1, sum_mu)[:, :, None]
        fwd = jnp.einsum('pbi,oi->pbo', mu_prev, W) + b
        embed_pass = along_p(T2, fwd)
        mu[rho_idx + 1] = jax.nn.relu(t1f * mu[rho_idx + 1] + t2f * embed_pass + t3f * embed_sum)

    for rho_idx in range(L - 1, 0, -1):
        W, b = params['layer_wbs'][rho_idx - 1]
        mu_prev = mu[rho_idx]
        sum_mu = mu_prev.sum(-1)
        embed_sum = along_p(T3, sum_mu)[:, :, None] / W.shape[1]
        back = jnp.einsum('pbo,oi->pbi', mu_prev - b, W)
        embed_pass = along_p(T4, back)
        mu[rho_idx - 1] = jax.nn.relu(t1b_ * mu[rho_idx - 1] + t2b_ * embed_pass + t3b_ * embed_sum)

    w5, b5 = params['theta5']
    return jnp.einsum('pbn,p->bn', mu[0], w5[0]) + b5[0]


# ---------------------------------------------------------------------------
if __name__ == "__main__":
    T, p, B = 2, 16, 16                               # B=16, TB=8 -> grid of 2 steps
    dims = [16, 32, 8]                                # per-level widths n0, n1, n2

    key = jax.random.PRNGKey(0)
    kp, kd = jax.random.split(key)
    params = init_params(kp, T, p, dims)

    ks = jax.random.split(kd, 8)
    image = jax.random.normal(ks[0], (B, dims[0]), jnp.float32)
    lbs = [jax.random.normal(ks[1 + i], (B, dims[i]), jnp.float32) for i in range(len(dims))]
    ubs = [lbs[i] + jax.random.uniform(ks[4 + i], (B, dims[i]), jnp.float32)
           for i in range(len(dims))]
    rhos_prev = [jax.random.normal(ks[7], (B, 1, dims[i + 1]), jnp.float32)
                 for i in range(len(dims) - 1)]

    out = graphnet_forward_pallas(params, image, lbs, ubs, rhos_prev, TB=8)
    out = jax.block_until_ready(out)

    ref = graphnet_forward_ref(params, image, lbs, ubs, rhos_prev)
    if not bool(jnp.allclose(out, ref, rtol=1e-3, atol=1e-3)):
        raise ValueError("Pallas result mismatch, max abs diff = %e"
                         % float(jnp.max(jnp.abs(out - ref))))
    print("KERNEL_OK")
</pallas_src>

<mosaic_0001>
module attributes {stable_mosaic.version = 11 : i64} {
  func.func @kernel(%arg0: i32, %arg1: memref<3xf32, #tpu.memory_space<smem>>, %arg2: memref<1x3x128xf32, #tpu.memory_space<vmem>>, %arg3: memref<1x3x384xf32, #tpu.memory_space<vmem>>, %arg4: memref<16x811xf32, #tpu.memory_space<vmem>>, %arg5: memref<256x1536xf32, #tpu.memory_space<vmem>>, %arg6: memref<1x1x128xf32, #tpu.memory_space<vmem>>) attributes {dimension_semantics = [#tpu.dimension_semantics<parallel>], iteration_bounds = array<i64: 2>, scalar_prefetch = 1 : i64, scratch_operands = 0 : i64, tpu.core_type = #tpu.core_type<tc>, window_params = [{transform_indices = @transform_0, window_bounds = array<i64: 1, 3, 128>}, {transform_indices = @transform_1, window_bounds = array<i64: 1, 3, 384>}, {pipeline_mode = #tpu.pipeline_mode<synchronous>, transform_indices = @transform_2, window_bounds = array<i64: 16, 811>}, {pipeline_mode = #tpu.pipeline_mode<synchronous>, transform_indices = @transform_3, window_bounds = array<i64: 256, 1536>}, {transform_indices = @transform_4, window_bounds = array<i64: 1, 1, 128>}]} {
    %c0 = arith.constant 0 : index
    %0 = memref.load %arg1[%c0] : memref<3xf32, #tpu.memory_space<smem>>
    %c1 = arith.constant 1 : index
    %1 = memref.load %arg1[%c1] : memref<3xf32, #tpu.memory_space<smem>>
    %c2 = arith.constant 2 : index
    %2 = memref.load %arg1[%c2] : memref<3xf32, #tpu.memory_space<smem>>
    %c0_0 = arith.constant 0 : index
    %c0_1 = arith.constant 0 : index
    %c0_2 = arith.constant 0 : index
    %3 = vector.load %arg2[%c0_0, %c0_1, %c0_2] : memref<1x3x128xf32, #tpu.memory_space<vmem>>, vector<1x3x128xf32>
    %4 = vector.shape_cast %3 : vector<1x3x128xf32> to vector<3x128xf32>
    %c0_3 = arith.constant 0 : index
    %c0_4 = arith.constant 0 : index
    %5 = vector.load %arg4[%c0_3, %c0_4] : memref<16x811xf32, #tpu.memory_space<vmem>>, vector<16x3xf32>
    %cst = arith.constant dense<0.000000e+00> : vector<16x128xf32>
    %6 = tpu.matmul %5, %4, %cst {dimension_numbers = #tpu.dot_dimension_numbers<[1], [0], [0], [1], [0, 0, 1, 1], [], []>} : vector<16x3xf32>, vector<3x128xf32>, vector<16x128xf32> -> vector<16x128xf32>
    %c0_5 = arith.constant 0 : index
    %c3 = arith.constant 3 : index
    %7 = vector.load %arg4[%c0_5, %c3] : memref<16x811xf32, #tpu.memory_space<vmem>>, vector<16x1xf32>
    %8 = vector.broadcast %7 : vector<16x1xf32> to vector<16x128xf32>
    %9 = arith.addf %6, %8 : vector<16x128xf32>
    %cst_6 = arith.constant 0.000000e+00 : f32
    %10 = vector.broadcast %cst_6 : f32 to vector<16x128xf32>
    %11 = arith.maximumf %9, %10 : vector<16x128xf32>
    %c0_7 = arith.constant 0 : index
    %c4 = arith.constant 4 : index
    %12 = vector.load %arg4[%c0_7, %c4] : memref<16x811xf32, #tpu.memory_space<vmem>>, vector<16x16xf32>
    %cst_8 = arith.constant dense<0.000000e+00> : vector<16x128xf32>
    %13 = tpu.matmul %12, %11, %cst_8 {dimension_numbers = #tpu.dot_dimension_numbers<[1], [0], [0], [1], [0, 0, 1, 1], [], []>} : vector<16x16xf32>, vector<16x128xf32>, vector<16x128xf32> -> vector<16x128xf32>
    %c0_9 = arith.constant 0 : index
    %c20 = arith.constant 20 : index
    %14 = vector.load %arg4[%c0_9, %c20] : memref<16x811xf32, #tpu.memory_space<vmem>>, vector<16x1xf32>
    %15 = vector.broadcast %14 : vector<16x1xf32> to vector<16x128xf32>
    %16 = arith.addf %13, %15 : vector<16x128xf32>
    %cst_10 = arith.constant 0.000000e+00 : f32
    %17 = vector.broadcast %cst_10 : f32 to vector<16x128xf32>
    %18 = arith.maximumf %16, %17 : vector<16x128xf32>
    %c0_11 = arith.constant 0 : index
    %c0_12 = arith.constant 0 : index
    %c0_13 = arith.constant 0 : index
    %19 = vector.load %arg3[%c0_11, %c0_12, %c0_13] : memref<1x3x384xf32, #tpu.memory_space<vmem>>, vector<1x3x384xf32>
    %20 = vector.shape_cast %19 : vector<1x3x384xf32> to vector<3x384xf32>
    %c0_14 = arith.constant 0 : index
    %c21 = arith.constant 21 : index
    %21 = vector.load %arg4[%c0_14, %c21] : memref<16x811xf32, #tpu.memory_space<vmem>>, vector<16x3xf32>
    %cst_15 = arith.constant dense<0.000000e+00> : vector<16x384xf32>
    %22 = tpu.matmul %21, %20, %cst_15 {dimension_numbers = #tpu.dot_dimension_numbers<[1], [0], [0], [1], [0, 0, 1, 1], [], []>} : vector<16x3xf32>, vector<3x384xf32>, vector<16x384xf32> -> vector<16x384xf32>
    %c0_16 = arith.constant 0 : index
    %c24 = arith.constant 24 : index
    %23 = vector.load %arg4[%c0_16, %c24] : memref<16x811xf32, #tpu.memory_space<vmem>>, vector<16x1xf32>
    %24 = vector.broadcast %23 : vector<16x1xf32> to vector<16x384xf32>
    %25 = arith.addf %22, %24 : vector<16x384xf32>
    %cst_17 = arith.constant 0.000000e+00 : f32
    %26 = vector.broadcast %cst_17 : f32 to vector<16x384xf32>
    %27 = arith.maximumf %25, %26 : vector<16x384xf32>
    %c0_18 = arith.constant 0 : index
    %c25 = arith.constant 25 : index
    %28 = vector.load %arg4[%c0_18, %c25] : memref<16x811xf32, #tpu.memory_space<vmem>>, vector<16x16xf32>
    %cst_19 = arith.constant dense<0.000000e+00> : vector<16x384xf32>
    %29 = tpu.matmul %28, %27, %cst_19 {dimension_numbers = #tpu.dot_dimension_numbers<[1], [0], [0], [1], [0, 0, 1, 1], [], []>} : vector<16x16xf32>, vector<16x384xf32>, vector<16x384xf32> -> vector<16x384xf32>
    %c0_20 = arith.constant 0 : index
    %c41 = arith.constant 41 : index
    %30 = vector.load %arg4[%c0_20, %c41] : memref<16x811xf32, #tpu.memory_space<vmem>>, vector<16x1xf32>
    %31 = vector.broadcast %30 : vector<16x1xf32> to vector<16x384xf32>
    %32 = arith.addf %29, %31 : vector<16x384xf32>
    %cst_21 = arith.constant 0.000000e+00 : f32
    %33 = vector.broadcast %cst_21 : f32 to vector<16x384xf32>
    %34 = arith.maximumf %32, %33 : vector<16x384xf32>
    %35 = vector.extract_strided_slice %34 {offsets = [0, 0], sizes = [16, 256], strides = [1, 1]} : vector<16x384xf32> to vector<16x256xf32>
    %36 = vector.extract_strided_slice %34 {offsets = [0, 256], sizes = [16, 64], strides = [1, 1]} : vector<16x384xf32> to vector<16x64xf32>
    %c0_22 = arith.constant 0 : index
    %c42 = arith.constant 42 : index
    %37 = vector.load %arg4[%c0_22, %c42] : memref<16x811xf32, #tpu.memory_space<vmem>>, vector<16x16xf32>
    %c0_23 = arith.constant 0 : index
    %c58 = arith.constant 58 : index
    %38 = vector.load %arg4[%c0_23, %c58] : memref<16x811xf32, #tpu.memory_space<vmem>>, vector<16x16xf32>
    %c0_24 = arith.constant 0 : index
    %c74 = arith.constant 74 : index
    %39 = vector.load %arg4[%c0_24, %c74] : memref<16x811xf32, #tpu.memory_space<vmem>>, vector<16x16xf32>
    %c0_25 = arith.constant 0 : index
    %c90 = arith.constant 90 : index
    %40 = vector.load %arg4[%c0_25, %c90] : memref<16x811xf32, #tpu.memory_space<vmem>>, vector<16x16xf32>
    %c0_26 = arith.constant 0 : index
    %c0_27 = arith.constant 0 : index
    %41 = vector.load %arg5[%c0_26, %c0_27] : memref<256x1536xf32, #tpu.memory_space<vmem>>, vector<128x256xf32>
    %cst_28 = arith.constant dense<0.000000e+00> : vector<16x256xf32>
    %42 = tpu.matmul %18, %41, %cst_28 {dimension_numbers = #tpu.dot_dimension_numbers<[1], [0], [0], [1], [0, 0, 1, 1], [], []>} : vector<16x128xf32>, vector<128x256xf32>, vector<16x256xf32> -> vector<16x256xf32>
    %c0_29 = arith.constant 0 : index
    %c256 = arith.constant 256 : index
    %43 = vector.load %arg5[%c0_29, %c256] : memref<256x1536xf32, #tpu.memory_space<vmem>>, vector<128x256xf32>
    %cst_30 = arith.constant dense<0.000000e+00> : vector<16x256xf32>
    %44 = tpu.matmul %18, %43, %cst_30 {dimension_numbers = #tpu.dot_dimension_numbers<[1], [0], [0], [1], [0, 0, 1, 1], [], []>} : vector<16x128xf32>, vector<128x256xf32>, vector<16x256xf32> -> vector<16x256xf32>
    %45 = vector.broadcast %0 : f32 to vector<16x256xf32>
    %46 = arith.mulf %45, %35 : vector<16x256xf32>
    %cst_31 = arith.constant dense<0.000000e+00> : vector<16x256xf32>
    %47 = tpu.matmul %38, %42, %cst_31 {dimension_numbers = #tpu.dot_dimension_numbers<[1], [0], [0], [1], [0, 0, 1, 1], [], []>} : vector<16x16xf32>, vector<16x256xf32>, vector<16x256xf32> -> vector<16x256xf32>
    %48 = arith.addf %46, %47 : vector<16x256xf32>
    %cst_32 = arith.constant dense<0.000000e+00> : vector<16x256xf32>
    %49 = tpu.matmul %37, %44, %cst_32 {dimension_numbers = #tpu.dot_dimension_numbers<[1], [0], [0], [1], [0, 0, 1, 1], [], []>} : vector<16x16xf32>, vector<16x256xf32>, vector<16x256xf32> -> vector<16x256xf32>
    %50 = arith.addf %48, %49 : vector<16x256xf32>
    %c0_33 = arith.constant 0 : index
    %c106 = arith.constant 106 : index
    %51 = vector.load %arg4[%c0_33, %c106] : memref<16x811xf32, #tpu.memory_space<vmem>>, vector<16x256xf32>
    %52 = arith.addf %50, %51 : vector<16x256xf32>
    %cst_34 = arith.constant 0.000000e+00 : f32
    %53 = vector.broadcast %cst_34 : f32 to vector<16x256xf32>
    %54 = arith.maximumf %52, %53 : vector<16x256xf32>
    %c0_35 = arith.constant 0 : index
    %c512 = arith.constant 512 : index
    %55 = vector.load %arg5[%c0_35, %c512] : memref<256x1536xf32, #tpu.memory_space<vmem>>, vector<256x128xf32>
    %cst_36 = arith.constant dense<0.000000e+00> : vector<16x128xf32>
    %56 = tpu.matmul %54, %55, %cst_36 {dimension_numbers = #tpu.dot_dimension_numbers<[1], [0], [0], [1], [0, 0, 1, 1], [], []>} : vector<16x256xf32>, vector<256x128xf32>, vector<16x128xf32> -> vector<16x128xf32>
    %57 = vector.extract_strided_slice %56 {offsets = [0, 0], sizes = [16, 64], strides = [1, 1]} : vector<16x128xf32> to vector<16x64xf32>
    %c0_37 = arith.constant 0 : index
    %c640 = arith.constant 640 : index
    %58 = vector.load %arg5[%c0_37, %c640] : memref<256x1536xf32, #tpu.memory_space<vmem>>, vector<256x128xf32>
    %cst_38 = arith.constant dense<0.000000e+00> : vector<16x128xf32>
    %59 = tpu.matmul %54, %58, %cst_38 {dimension_numbers = #tpu.dot_dimension_numbers<[1], [0], [0], [1], [0, 0, 1, 1], [], []>} : vector<16x256xf32>, vector<256x128xf32>, vector<16x128xf32> -> vector<16x128xf32>
    %60 = vector.extract_strided_slice %59 {offsets = [0, 0], sizes = [16, 64], strides = [1, 1]} : vector<16x128xf32> to vector<16x64xf32>
    %61 = vector.broadcast %0 : f32 to vector<16x64xf32>
    %62 = arith.mulf %61, %36 : vector<16x64xf32>
    %cst_39 = arith.constant dense<0.000000e+00> : vector<16x64xf32>
    %63 = tpu.matmul %38, %57, %cst_39 {dimension_numbers = #tpu.dot_dimension_numbers<[1], [0], [0], [1], [0, 0, 1, 1], [], []>} : vector<16x16xf32>, vector<16x64xf32>, vector<16x64xf32> -> vector<16x64xf32>
    %64 = arith.addf %62, %63 : vector<16x64xf32>
    %cst_40 = arith.constant dense<0.000000e+00> : vector<16x64xf32>
    %65 = tpu.matmul %37, %60, %cst_40 {dimension_numbers = #tpu.dot_dimension_numbers<[1], [0], [0], [1], [0, 0, 1, 1], [], []>} : vector<16x16xf32>, vector<16x64xf32>, vector<16x64xf32> -> vector<16x64xf32>
    %66 = arith.addf %64, %65 : vector<16x64xf32>
    %c0_41 = arith.constant 0 : index
    %c362 = arith.constant 362 : index
    %67 = vector.load %arg4[%c0_41, %c362] : memref<16x811xf32, #tpu.memory_space<vmem>>, vector<16x64xf32>
    %68 = arith.addf %66, %67 : vector<16x64xf32>
    %cst_42 = arith.constant 0.000000e+00 : f32
    %69 = vector.broadcast %cst_42 : f32 to vector<16x64xf32>
    %70 = arith.maximumf %68, %69 : vector<16x64xf32>
    %c0_43 = arith.constant 0 : index
    %c1024 = arith.constant 1024 : index
    %71 = vector.load %arg5[%c0_43, %c1024] : memref<256x1536xf32, #tpu.memory_space<vmem>>, vector<64x256xf32>
    %cst_44 = arith.constant dense<0.000000e+00> : vector<16x256xf32>
    %72 = tpu.matmul %70, %71, %cst_44 {dimension_numbers = #tpu.dot_dimension_numbers<[1], [0], [0], [1], [0, 0, 1, 1], [], []>} : vector<16x64xf32>, vector<64x256xf32>, vector<16x256xf32> -> vector<16x256xf32>
    %c0_45 = arith.constant 0 : index
    %c1280 = arith.constant 1280 : index
    %73 = vector.load %arg5[%c0_45, %c1280] : memref<256x1536xf32, #tpu.memory_space<vmem>>, vector<64x256xf32>
    %cst_46 = arith.constant dense<0.000000e+00> : vector<16x256xf32>
    %74 = tpu.matmul %70, %73, %cst_46 {dimension_numbers = #tpu.dot_dimension_numbers<[1], [0], [0], [1], [0, 0, 1, 1], [], []>} : vector<16x64xf32>, vector<64x256xf32>, vector<16x256xf32> -> vector<16x256xf32>
    %75 = vector.broadcast %1 : f32 to vector<16x256xf32>
    %76 = arith.mulf %75, %54 : vector<16x256xf32>
    %cst_47 = arith.constant dense<0.000000e+00> : vector<16x256xf32>
    %77 = tpu.matmul %40, %72, %cst_47 {dimension_numbers = #tpu.dot_dimension_numbers<[1], [0], [0], [1], [0, 0, 1, 1], [], []>} : vector<16x16xf32>, vector<16x256xf32>, vector<16x256xf32> -> vector<16x256xf32>
    %78 = arith.addf %76, %77 : vector<16x256xf32>
    %cst_48 = arith.constant dense<0.000000e+00> : vector<16x256xf32>
    %79 = tpu.matmul %39, %74, %cst_48 {dimension_numbers = #tpu.dot_dimension_numbers<[1], [0], [0], [1], [0, 0, 1, 1], [], []>} : vector<16x16xf32>, vector<16x256xf32>, vector<16x256xf32> -> vector<16x256xf32>
    %80 = arith.addf %78, %79 : vector<16x256xf32>
    %c0_49 = arith.constant 0 : index
    %c554 = arith.constant 554 : index
    %81 = vector.load %arg4[%c0_49, %c554] : memref<16x811xf32, #tpu.memory_space<vmem>>, vector<16x256xf32>
    %82 = arith.addf %80, %81 : vector<16x256xf32>
    %cst_50 = arith.constant 0.000000e+00 : f32
    %83 = vector.broadcast %cst_50 : f32 to vector<16x256xf32>
    %84 = arith.maximumf %82, %83 : vector<16x256xf32>
    %c0_51 = arith.constant 0 : index
    %c768 = arith.constant 768 : index
    %85 = vector.load %arg5[%c0_51, %c768] : memref<256x1536xf32, #tpu.memory_space<vmem>>, vector<256x128xf32>
    %cst_52 = arith.constant dense<0.000000e+00> : vector<16x128xf32>
    %86 = tpu.matmul %84, %85, %cst_52 {dimension_numbers = #tpu.dot_dimension_numbers<[1], [0], [0], [1], [0, 0, 1, 1], [], []>} : vector<16x256xf32>, vector<256x128xf32>, vector<16x128xf32> -> vector<16x128xf32>
    %c0_53 = arith.constant 0 : index
    %c896 = arith.constant 896 : index
    %87 = vector.load %arg5[%c0_53, %c896] : memref<256x1536xf32, #tpu.memory_space<vmem>>, vector<256x128xf32>
    %cst_54 = arith.constant dense<0.000000e+00> : vector<16x128xf32>
    %88 = tpu.matmul %84, %87, %cst_54 {dimension_numbers = #tpu.dot_dimension_numbers<[1], [0], [0], [1], [0, 0, 1, 1], [], []>} : vector<16x256xf32>, vector<256x128xf32>, vector<16x128xf32> -> vector<16x128xf32>
    %89 = vector.broadcast %1 : f32 to vector<16x128xf32>
    %90 = arith.mulf %89, %18 : vector<16x128xf32>
    %cst_55 = arith.constant dense<0.000000e+00> : vector<16x128xf32>
    %91 = tpu.matmul %40, %86, %cst_55 {dimension_numbers = #tpu.dot_dimension_numbers<[1], [0], [0], [1], [0, 0, 1, 1], [], []>} : vector<16x16xf32>, vector<16x128xf32>, vector<16x128xf32> -> vector<16x128xf32>
    %92 = arith.addf %90, %91 : vector<16x128xf32>
    %cst_56 = arith.constant dense<0.000000e+00> : vector<16x128xf32>
    %93 = tpu.matmul %39, %88, %cst_56 {dimension_numbers = #tpu.dot_dimension_numbers<[1], [0], [0], [1], [0, 0, 1, 1], [], []>} : vector<16x16xf32>, vector<16x128xf32>, vector<16x128xf32> -> vector<16x128xf32>
    %94 = arith.addf %92, %93 : vector<16x128xf32>
    %c0_57 = arith.constant 0 : index
    %c426 = arith.constant 426 : index
    %95 = vector.load %arg4[%c0_57, %c426] : memref<16x811xf32, #tpu.memory_space<vmem>>, vector<16x128xf32>
    %96 = arith.addf %94, %95 : vector<16x128xf32>
    %cst_58 = arith.constant 0.000000e+00 : f32
    %97 = vector.broadcast %cst_58 : f32 to vector<16x128xf32>
    %98 = arith.maximumf %96, %97 : vector<16x128xf32>
    %c0_59 = arith.constant 0 : index
    %c810 = arith.constant 810 : index
    %99 = vector.load %arg4[%c0_59, %c810] : memref<16x811xf32, #tpu.memory_space<vmem>>, vector<16x1xf32>
    %100 = vector.broadcast %99 : vector<16x1xf32> to vector<16x128xf32>
    %101 = arith.mulf %100, %98 : vector<16x128xf32>
    %cst_60 = arith.constant dense<0.000000e+00> : vector<128xf32>
    %102 = vector.multi_reduction <add>, %101, %cst_60 [0] : vector<16x128xf32> to vector<128xf32>
    %103 = vector.shape_cast %102 : vector<128xf32> to vector<1x128xf32>
    %104 = vector.broadcast %2 : f32 to vector<1x128xf32>
    %105 = arith.addf %103, %104 : vector<1x128xf32>
    %c0_61 = arith.constant 0 : index
    %c0_62 = arith.constant 0 : index
    %c0_63 = arith.constant 0 : index
    %106 = vector.load %arg6[%c0_61, %c0_62, %c0_63] : memref<1x1x128xf32, #tpu.memory_space<vmem>>, vector<1x1x128xf32>
    %107 = vector.shape_cast %106 : vector<1x1x128xf32> to vector<1x128xf32>
    %108 = vector.shape_cast %105 : vector<1x128xf32> to vector<1x1x128xf32>
    tpu.vector_store %arg6[%c0_61, %c0_62, %c0_63], %108 {strides = array<i32>} : memref<1x1x128xf32, #tpu.memory_space<vmem>>, vector<1x1x128xf32>,
    return
  }
  func.func @transform_0(%arg0: i32, %arg1: memref<3xf32, #tpu.memory_space<smem>>) -> (i32, i32, i32) {
    %c0_i32 = arith.constant 0 : i32
    %c0_i32_0 = arith.constant 0 : i32
    %c0_i32_1 = arith.constant 0 : i32
    return %arg0, %c0_i32, %c0_i32_0 : i32, i32, i32
  }
  func.func @transform_1(%arg0: i32, %arg1: memref<3xf32, #tpu.memory_space<smem>>) -> (i32, i32, i32) {
    %c0_i32 = arith.constant 0 : i32
    %c0_i32_0 = arith.constant 0 : i32
    %c0_i32_1 = arith.constant 0 : i32
    return %arg0, %c0_i32, %c0_i32_0 : i32, i32, i32
  }
  func.func @transform_2(%arg0: i32, %arg1: memref<3xf32, #tpu.memory_space<smem>>) -> (i32, i32) {
    %c0_i32 = arith.constant 0 : i32
    %c0_i32_0 = arith.constant 0 : i32
    %c0_i32_1 = arith.constant 0 : i32
    return %c0_i32, %c0_i32_0 : i32, i32
  }
  func.func @transform_3(%arg0: i32, %arg1: memref<3xf32, #tpu.memory_space<smem>>) -> (i32, i32) {
    %c0_i32 = arith.constant 0 : i32
    %c0_i32_0 = arith.constant 0 : i32
    %c0_i32_1 = arith.constant 0 : i32
    return %c0_i32, %c0_i32_0 : i32, i32
  }
  func.func @transform_4(%arg0: i32, %arg1: memref<3xf32, #tpu.memory_space<smem>>) -> (i32, i32, i32) {
    %c0_i32 = arith.constant 0 : i32
    %c0_i32_0 = arith.constant 0 : i32
    %c0_i32_1 = arith.constant 0 : i32
    return %arg0, %c0_i32, %c0_i32_0 : i32, i32, i32
  }
}

</mosaic_0001>

<llo_original>
// kernel: tpu_custom_call.1
$region0: #{tpu_custom_call.1}
  #allocation0 [shape = 'u32[]', space=smem, size = 0x4, offset = 0x4, fixed_abs, tag = 'smem constant byte address 0x4 - core index']
  #allocation1 [shape = 'u32[144,128]{1,0:T(1,128)}', space=vmem, size = 0x12000, scoped, tag = 'internal scratch']
  #allocation2 [shape = 's32[1]{0}', space=sflag, size = 0x4, scoped, tag = 'scoped memory for tpu_custom_call.1']
  #allocation3 [shape = 'u8[512]{0}', space=smem, size = 0x200, scoped, tag = 'prefetched SMEM operand 0']
  %s0 = inlined_call_operand.hbm [shape: f32[3], index: 0, kind: input, shape index: {}]
  %s1 = inlined_call_operand.vmem [shape: f32[2,3,128], index: 1, kind: input, shape index: {}]
  %s2 = inlined_call_operand.vmem [shape: f32[2,3,384], index: 2, kind: input, shape index: {}]
  %s3 = inlined_call_operand.hbm [shape: f32[16,811], index: 3, kind: input, shape index: {}]
  %s4 = inlined_call_operand.hbm [shape: f32[256,1536], index: 4, kind: input, shape index: {}]
  %s5 = inlined_call_operand.hbm [shape: f32[2,1,128], index: 5, kind: output, shape index: {}]
  %s6 = sld [smem:[#allocation0]]
  $region57: #{tpu_custom_call.1} parent=0
    _
  %s8 = ssub.s32 1, %s6
  %s9 = scalar_select 0, %s8, %s6
  %11 = dma.hbm_to_smem %s0, 16, [#allocation3], [#allocation2]
  %12 = dma.done [#allocation2], 16
  %13 = sfence
  $region1: #{tpu_custom_call.1} parent=0
    #allocation4 [shape = 'u8[57344]{0}', space=vmem, size = 0xe000, scoped, tag = 'input window, operand 3, single buffered']
    #allocation5 [shape = 's32[2]{0}', space=sflag, size = 0x8, scoped, tag = 'scoped memory for tpu_custom_call.1']
    #allocation6 [shape = 's32[2]{0}', space=sflag, size = 0x8, scoped, tag = 'scoped memory for tpu_custom_call.1']
    #allocation7 [shape = 'u8[1572864]{0}', space=vmem, size = 0x180000, scoped, tag = 'input window, operand 4, single buffered']
    #allocation8 [shape = 's32[1]{0}', space=sflag, size = 0x4, scoped, tag = 'scoped memory for tpu_custom_call.1']
    #allocation9 [shape = 'u8[1024]{0}', space=vmem, size = 0x400, scoped, tag = 'output window, operand 0']
    %14 = vsyncpa [#allocation5], 0
    %15 = vsyncpa [#allocation8], 0
    %16 = vsyncpa [#allocation6], 0
    %s17 = scalar_lea.sflag [#allocation6], 1
    %18 = vsyncpa %s17, 0
    loop: start=0, step=1, limit=4
    $region2: #{tpu_custom_call.1} parent=1 // loop_pre_header
      _
    $region3: #{tpu_custom_call.1} parent=1 // loop_header
      %s20 = sphi 0, %s24
      %p21 = scmp.ge.s32.totalorder %s20, 4
      %s30 = sphi 0, %s32
      %s33 = sphi 0, %s30
      %s34 = sphi 0, %s33
      %s50 = sphi 0, %s34
      %s56 = sphi 0, %s58
      %s59 = sphi 0, %s56
      %s60 = sphi 0, %s59
      %s76 = sphi 0, %s60
      %s80 = sphi 0, %s80
      %s82 = sphi 0, %s80
      %s83 = sphi 0, %s82
      %s97 = sphi 0, %s83
      %s101 = sphi 0, %s101
      %s103 = sphi 0, %s101
      %s104 = sphi 0, %s103
      %s118 = sphi 0, %s104
      %s124 = sphi 0, %s126
      %s127 = sphi 0, %s124
      %s128 = sphi 0, %s127
      %s144 = sphi 0, %s128
    $region4: #{tpu_custom_call.1} parent=1 // loop_header_branch
      %23 = sbr.rel (%p21) target = $region8
    $region5: #{tpu_custom_call.1} parent=1 // loop_body
      %s25 = ssub.s32 %s20, 1
      %s26 = ssub.s32 %s20, 2
      %s27 = sadd.s32 %s20, 1
      %s28 = ssub.s32 %s20, %s27
      %p29 = scmp.eq.s32.totalorder %s28, 0
      %s31 = sadd.s32 %s30, 1
      %s32 = scalar_select %p29, %s30, %s31
      %p35 = pneg %p29
      %p36 = scmp.eq.s32.totalorder %s20, 1
      %p37 = por %p35, %p36
      %p38 = scmp.ne.s32.totalorder %s30, %s33
      %p39 = scmp.eq.s32.totalorder %s20, 0
      %p40 = por %p38, %p39
      %p41 = scmp.ne.s32.totalorder %s30, %s33
      %p42 = scmp.eq.s32.totalorder %s25, 1
      %p43 = por %p41, %p42
      %p44 = scmp.ne.s32.totalorder %s33, %s34
      %p45 = scmp.eq.s32.totalorder %s25, 0
      %p46 = por %p44, %p45
      %p47 = scmp.ne.s32.totalorder %s33, %s34
      %p48 = scmp.eq.s32.totalorder %s26, 1
      %p49 = por %p47, %p48
      %p51 = scmp.ne.s32.totalorder %s34, %s50
      %p52 = scmp.eq.s32.totalorder %s26, 0
      %p53 = por %p51, %p52
      %s54 = ssub.s32 %s20, %s27
      %p55 = scmp.eq.s32.totalorder %s54, 0
      %s57 = sadd.s32 %s56, 1
      %s58 = scalar_select %p55, %s56, %s57
      %p61 = pneg %p55
      %p62 = scmp.eq.s32.totalorder %s20, 1
      %p63 = por %p61, %p62
      %p64 = scmp.ne.s32.totalorder %s56, %s59
      %p65 = scmp.eq.s32.totalorder %s20, 0
      %p66 = por %p64, %p65
      %p67 = scmp.ne.s32.totalorder %s56, %s59
      %p68 = scmp.eq.s32.totalorder %s25, 1
      %p69 = por %p67, %p68
      %p70 = scmp.ne.s32.totalorder %s59, %s60
      %p71 = scmp.eq.s32.totalorder %s25, 0
      %p72 = por %p70, %p71
      %p73 = scmp.ne.s32.totalorder %s59, %s60
      %p74 = scmp.eq.s32.totalorder %s26, 1
      %p75 = por %p73, %p74
      %p77 = scmp.ne.s32.totalorder %s60, %s76
      %p78 = scmp.eq.s32.totalorder %s26, 0
      %p79 = por %p77, %p78
      %s81 = sadd.s32 %s80, 1
      %p84 = scmp.eq.s32.totalorder %s20, 1
      %p85 = scmp.ne.s32.totalorder %s80, %s82
      %p86 = scmp.eq.s32.totalorder %s20, 0
      %p87 = por %p85, %p86
      %p88 = scmp.ne.s32.totalorder %s80, %s82
      %p89 = scmp.eq.s32.totalorder %s25, 1
      %p90 = por %p88, %p89
      %p91 = scmp.ne.s32.totalorder %s82, %s83
      %p92 = scmp.eq.s32.totalorder %s25, 0
      %p93 = por %p91, %p92
      %p94 = scmp.ne.s32.totalorder %s82, %s83
      %p95 = scmp.eq.s32.totalorder %s26, 1
      %p96 = por %p94, %p95
      %p98 = scmp.ne.s32.totalorder %s83, %s97
      %p99 = scmp.eq.s32.totalorder %s26, 0
      %p100 = por %p98, %p99
      %s102 = sadd.s32 %s101, 1
      %p105 = scmp.eq.s32.totalorder %s20, 1
      %p106 = scmp.ne.s32.totalorder %s101, %s103
      %p107 = scmp.eq.s32.totalorder %s20, 0
      %p108 = por %p106, %p107
      %p109 = scmp.ne.s32.totalorder %s101, %s103
      %p110 = scmp.eq.s32.totalorder %s25, 1
      %p111 = por %p109, %p110
      %p112 = scmp.ne.s32.totalorder %s103, %s104
      %p113 = scmp.eq.s32.totalorder %s25, 0
      %p114 = por %p112, %p113
      %p115 = scmp.ne.s32.totalorder %s103, %s104
      %p116 = scmp.eq.s32.totalorder %s26, 1
      %p117 = por %p115, %p116
      %p119 = scmp.ne.s32.totalorder %s104, %s118
      %p120 = scmp.eq.s32.totalorder %s26, 0
      %p121 = por %p119, %p120
      %s122 = ssub.s32 %s20, %s27
      %p123 = scmp.eq.s32.totalorder %s122, 0
      %s125 = sadd.s32 %s124, 1
      %s126 = scalar_select %p123, %s124, %s125
      %p129 = pneg %p123
      %p130 = scmp.eq.s32.totalorder %s20, 1
      %p131 = por %p129, %p130
      %p132 = scmp.ne.s32.totalorder %s124, %s127
      %p133 = scmp.eq.s32.totalorder %s20, 0
      %p134 = por %p132, %p133
      %p135 = scmp.ne.s32.totalorder %s124, %s127
      %p136 = scmp.eq.s32.totalorder %s25, 1
      %p137 = por %p135, %p136
      %p138 = scmp.ne.s32.totalorder %s127, %s128
      %p139 = scmp.eq.s32.totalorder %s25, 0
      %p140 = por %p138, %p139
      %p141 = scmp.ne.s32.totalorder %s127, %s128
      %p142 = scmp.eq.s32.totalorder %s26, 1
      %p143 = por %p141, %p142
      %p145 = scmp.ne.s32.totalorder %s128, %s144
      %p146 = scmp.eq.s32.totalorder %s26, 0
      %p147 = por %p145, %p146
      %p148 = scmp.le.s32.totalorder 1, %s20
      %p149 = scmp.lt.s32.totalorder %s20, 3
      %p150 = pnand %p148, %p149
      %p151 = pneg %p150
      // Predicated region
      $region9: #{tpu_custom_call.1} parent=5 // pred_check
        _
      $region10: #{tpu_custom_call.1} parent=5 // pred_check_branch
        %153 = sbr.rel (%p150) target = $region12
      $region11: #{tpu_custom_call.1} parent=5 // pred_region
        %s154 = ssub.s32 %s20, 1
        // Predicated region
        $region13: #{tpu_custom_call.1} parent=11 // pred_check
          %p155 = pneg %p93
        $region14: #{tpu_custom_call.1} parent=11 // pred_check_branch
          %157 = sbr.rel (%p155) target = $region16
        $region15: #{tpu_custom_call.1} parent=11 // pred_region
          %s159 = ssub.s32 1792, 1792
          %160 = vsyncadd [#allocation5], %s159
          %s161 = sshll.u32 [#allocation4], 4
          %s162 = int_to_ptr.vmem [resolvable:$true] %s161
          %167 = dma.hbm_to_vmem [thread:$0]  %s3, 1792, %s162, [#allocation5], 896, 896, 56
        $region16: #{tpu_custom_call.1} parent=11 // pred_fallthru
          _
        // Predicated region
        $region17: #{tpu_custom_call.1} parent=11 // pred_check
          %p168 = pneg %p114
        $region18: #{tpu_custom_call.1} parent=11 // pred_check_branch
          %170 = sbr.rel (%p168) target = $region20
        $region19: #{tpu_custom_call.1} parent=11 // pred_region
          %s172 = ssub.s32 49152, 49152
          %173 = vsyncadd [#allocation8], %s172
          %s174 = sshll.u32 [#allocation7], 4
          %s175 = int_to_ptr.vmem [resolvable:$true] %s174
          %180 = dma.hbm_to_vmem [thread:$0]  %s4, 49152, %s175, [#allocation8], 1536, 1536, 96
        $region20: #{tpu_custom_call.1} parent=11 // pred_fallthru
          _
      $region12: #{tpu_custom_call.1} parent=5 // pred_fallthru
        _
      %p181 = scmp.lt.s32.totalorder %s20, 2
      // Predicated region
      $region21: #{tpu_custom_call.1} parent=5 // pred_check
        %p182 = pneg %p181
      $region22: #{tpu_custom_call.1} parent=5 // pred_check_branch
        %184 = sbr.rel (%p182) target = $region24
      $region23: #{tpu_custom_call.1} parent=5 // pred_region
        // Predicated region
        $region25: #{tpu_custom_call.1} parent=23 // pred_check
          %p185 = pneg %p40
        $region26: #{tpu_custom_call.1} parent=23 // pred_check_branch
          %187 = sbr.rel (%p185) target = $region28
        $region27: #{tpu_custom_call.1} parent=23 // pred_region
          %p188 = scmp.lt.s32.totalorder %s20, 1
          %s189 = scalar_select %p188, %s20, 1
          %s190 = smul.addr %s189, 4
          %s191 = scalar_lea.vmem %s1, %s190
        $region28: #{tpu_custom_call.1} parent=23 // pred_fallthru
          _
        // Predicated region
        $region29: #{tpu_custom_call.1} parent=23 // pred_check
          %p192 = pneg %p66
        $region30: #{tpu_custom_call.1} parent=23 // pred_check_branch
          %194 = sbr.rel (%p192) target = $region32
        $region31: #{tpu_custom_call.1} parent=23 // pred_region
          %p195 = scmp.lt.s32.totalorder %s20, 1
          %s196 = scalar_select %p195, %s20, 1
          %s197 = smul.addr %s196, 3
          %s198 = smul.addr %s197, 4
          %s199 = scalar_lea.vmem %s2, %s198
        $region32: #{tpu_custom_call.1} parent=23 // pred_fallthru
          _
      $region24: #{tpu_custom_call.1} parent=5 // pred_fallthru
        _
      %p200 = scmp.le.s32.totalorder 1, %s20
      %p201 = scmp.lt.s32.totalorder %s20, 3
      %p202 = pnand %p200, %p201
      %p203 = pneg %p202
      // Predicated region
      $region33: #{tpu_custom_call.1} parent=5 // pred_check
        _
      $region34: #{tpu_custom_call.1} parent=5 // pred_check_branch
        %205 = sbr.rel (%p202) target = $region36
      $region35: #{tpu_custom_call.1} parent=5 // pred_region
        %s206 = ssub.s32 %s20, 1
        // Predicated region
        $region37: #{tpu_custom_call.1} parent=35 // pred_check
          %p207 = pneg %p93
        $region38: #{tpu_custom_call.1} parent=35 // pred_check_branch
          %209 = sbr.rel (%p207) target = $region40
        $region39: #{tpu_custom_call.1} parent=35 // pred_region
          %210 = dma.done [#allocation5], 1792
        $region40: #{tpu_custom_call.1} parent=35 // pred_fallthru
          _
        // Predicated region
        $region41: #{tpu_custom_call.1} parent=35 // pred_check
          %p211 = pneg %p114
        $region42: #{tpu_custom_call.1} parent=35 // pred_check_branch
          %213 = sbr.rel (%p211) target = $region44
        $region43: #{tpu_custom_call.1} parent=35 // pred_region
          %214 = dma.done [#allocation8], 49152
        $region44: #{tpu_custom_call.1} parent=35 // pred_fallthru
          _
        %p215 = scmp.lt.s32.totalorder %s25, 1
        %s216 = scalar_select %p215, %s25, 1
        %s217 = smul.addr %s216, 4
        %s218 = scalar_lea.vmem %s1, %s217
        %p219 = pneg %p46
        %p220 = pneg %p43
        %p221 = scmp.lt.s32.totalorder %s25, 1
        %s222 = scalar_select %p221, %s25, 1
        %s223 = smul.addr %s222, 3
        %s224 = smul.addr %s223, 4
        %s225 = scalar_lea.vmem %s2, %s224
        %p226 = pneg %p72
        %p227 = pneg %p69
        %p228 = pneg %p93
        %p229 = pneg %p90
        %p230 = pneg %p114
        %p231 = pneg %p111
        %p232 = pneg %p140
        %p233 = pneg %p137
        %s234 = sand.u32 %s127, 1
        %s235 = scalar_lea.sflag [#allocation6], %s234
        %s236 = sand.u32 %s127, 1
        %s237 = scalar_lea.vmem [#allocation9], %s236
        %p238 = scmp.lt.s32.totalorder %s25, 1
        %s239 = scalar_select %p238, %s25, 1
        %s240 = smul.addr %s239, 4
        %s241 = scalar_lea.vmem %s1, %s240
        %p242 = scmp.lt.s32.totalorder %s25, 1
        %s243 = scalar_select %p242, %s25, 1
        %s244 = smul.addr %s243, 3
        %s245 = smul.addr %s244, 4
        %s246 = scalar_lea.vmem %s2, %s245
        %s247 = sld [smem:[#allocation3]]
        %s248 = sld [smem:[#allocation3 + $0x1]]
        %s249 = sld [smem:[#allocation3 + $0x2]]
        %v250 = vld [vmem:[%s241] sm:$0x7]
        %v251 = vld [vmem:[#allocation4] sm:$0xff]
        %v252 = vld [vmem:[#allocation4 + $0x38] sm:$0xff]
        %254 = vset.pattern.permute.xlu0 3
        %255 = vperm.xlu0 %254, %v251
        %v256 = vpop.permute.xlu0 %255
        %259 = vset.pattern.permute.xlu0 3
        %260 = vperm.xlu0 %259, %v252
        %v261 = vpop.permute.xlu0 %260
        %vm263 = vcmask 23552
        %v264 = vsel %vm263, %v251, 0
        %v266 = vsel %vm263, %v252, 0
        %vm268 = vcmask 1042432
        %v270 = vsel %vm268, %v250, 0
        %272 = vmatprep.subr.mxu0 0.0
        %273 = vmatpush1.msra.mxu0 %v270
        %274 = vmatprep.subr.mxu0 0.0
        %275 = vmatpush1.msra.mxu0 0.0
        %276 = vmatprep.subr.mxu0 0.0
        %277 = vmatpush1.msra.mxu0 0.0
        %278 = vmatprep.subr.mxu0 0.0
        %279 = vmatpush1.msra.mxu0 0.0
        %280 = vmatprep.subr.mxu0 0.0
        %281 = vmatpush1.msra.mxu0 0.0
        %282 = vmatprep.subr.mxu0 0.0
        %283 = vmatpush1.msra.mxu0 0.0
        %284 = vmatprep.subr.mxu0 0.0
        %285 = vmatpush1.msra.mxu0 0.0
        %286 = vmatprep.subr.mxu0 0.0
        %287 = vmatpush1.msra.mxu0 0.0
        %288 = vmatprep.subr.mxu0 0.0
        %289 = vmatpush1.msra.mxu0 0.0
        %290 = vmatprep.subr.mxu0 0.0
        %291 = vmatpush1.msra.mxu0 0.0
        %292 = vmatprep.subr.mxu0 0.0
        %293 = vmatpush1.msra.mxu0 0.0
        %294 = vmatprep.subr.mxu0 0.0
        %295 = vmatpush1.msra.mxu0 0.0
        %296 = vmatprep.subr.mxu0 0.0
        %297 = vmatpush1.msra.mxu0 0.0
        %298 = vmatprep.subr.mxu0 0.0
        %299 = vmatpush1.msra.mxu0 0.0
        %300 = vmatprep.subr.mxu0 0.0
        %301 = vmatpush1.msra.mxu0 0.0
        %302 = vmatprep.subr.mxu0 0.0
        %303 = vmatpush1.msra.mxu0 0.0
        %304 = vmatprep.subr.mxu0 0.0
        %305 = vmatpush1.msra.mxu0 0.0
        %306 = vmatprep.subr.mxu0 0.0
        %307 = vmatpush1.msra.mxu0 0.0
        %308 = vmatprep.subr.mxu0 0.0
        %309 = vmatpush1.msra.mxu0 0.0
        %310 = vmatprep.subr.mxu0 0.0
        %311 = vmatpush1.msra.mxu0 0.0
        %312 = vmatprep.subr.mxu0 0.0
        %313 = vmatpush1.msra.mxu0 0.0
        %314 = vmatprep.subr.mxu0 0.0
        %315 = vmatpush1.msra.mxu0 0.0
        %316 = vmatprep.subr.mxu0 0.0
        %317 = vmatpush1.msra.mxu0 0.0
        %318 = vmatprep.subr.mxu0 0.0
        %319 = vmatpush1.msra.mxu0 0.0
        %320 = vmatprep.subr.mxu0 0.0
        %321 = vmatpush1.msra.mxu0 0.0
        %322 = vmatprep.subr.mxu0 0.0
        %323 = vmatpush1.msra.mxu0 0.0
        %324 = vmatprep.subr.mxu0 0.0
        %325 = vmatpush1.msra.mxu0 0.0
        %326 = vmatprep.subr.mxu0 0.0
        %327 = vmatpush1.msra.mxu0 0.0
        %328 = vmatprep.subr.mxu0 0.0
        %329 = vmatpush1.msra.mxu0 0.0
        %330 = vmatprep.subr.mxu0 0.0
        %331 = vmatpush1.msra.mxu0 0.0
        %332 = vmatprep.subr.mxu0 0.0
        %333 = vmatpush1.msra.mxu0 0.0
        %334 = vmatprep.subr.mxu0 0.0
        %335 = vmatpush1.msra.mxu0 0.0
        %336 = vmatprep.mubr.f32.mxu0 0.0
        %337 = vmatmul.mubr.f32.gmra.mrb[0].mxu0 %v264
        %v338 = vpop.f32.mrb[0].mxu0
        %v339 = vadd.f32 %v256, %v338
        %v340 = vpop.f32.mrb[0].mxu0
        %341 = vmatprep.mubr.f32.mxu0 0.0
        %342 = vmatmul.mubr.f32.gmra.mrb[0].mxu0 %v266
        %v343 = vpop.f32.mrb[0].mxu0
        %v344 = vadd.f32 %v261, %v343
        %v345 = vpop.f32.mrb[0].mxu0
        %346 = vdwg.mxu0
        %v347 = vmax.f32 %v339, 0.0
        %v348 = vmax.f32 %v344, 0.0
        %349 = vset.pattern.permute.xlu0 20
        %350 = vperm.xlu0 %349, %v251
        %v351 = vpop.permute.xlu0 %350
        %353 = vset.pattern.permute.xlu0 20
        %354 = vperm.xlu0 %353, %v252
        %v355 = vpop.permute.xlu0 %354
        %357 = vrot.lane.b32.xlu0 %v251, 124
        %v358 = vpop.permute.xlu0 %357
        %359 = vrot.lane.b32.xlu0 %v252, 124
        %v360 = vpop.permute.xlu0 %359
        %vm361 = vcmask 130048
        %v362 = vsel %vm361, %v358, 0
        %v364 = vsel %vm361, %v360, 0
        %366 = vmatprep.subr.mxu0 0.0
        %367 = vmatpush1.msra.mxu0 %v347
        %368 = vmatprep.subr.mxu0 0.0
        %369 = vmatpush1.msra.mxu0 %v348
        %370 = vmatprep.subr.mxu0 0.0
        %371 = vmatpush1.msra.mxu0 0.0
        %372 = vmatprep.subr.mxu0 0.0
        %373 = vmatpush1.msra.mxu0 0.0
        %374 = vmatprep.subr.mxu0 0.0
        %375 = vmatpush1.msra.mxu0 0.0
        %376 = vmatprep.subr.mxu0 0.0
        %377 = vmatpush1.msra.mxu0 0.0
        %378 = vmatprep.subr.mxu0 0.0
        %379 = vmatpush1.msra.mxu0 0.0
        %380 = vmatprep.subr.mxu0 0.0
        %381 = vmatpush1.msra.mxu0 0.0
        %382 = vmatprep.subr.mxu0 0.0
        %383 = vmatpush1.msra.mxu0 0.0
        %384 = vmatprep.subr.mxu0 0.0
        %385 = vmatpush1.msra.mxu0 0.0
        %386 = vmatprep.subr.mxu0 0.0
        %387 = vmatpush1.msra.mxu0 0.0
        %388 = vmatprep.subr.mxu0 0.0
        %389 = vmatpush1.msra.mxu0 0.0
        %390 = vmatprep.subr.mxu0 0.0
        %391 = vmatpush1.msra.mxu0 0.0
        %392 = vmatprep.subr.mxu0 0.0
        %393 = vmatpush1.msra.mxu0 0.0
        %394 = vmatprep.subr.mxu0 0.0
        %395 = vmatpush1.msra.mxu0 0.0
        %396 = vmatprep.subr.mxu0 0.0
        %397 = vmatpush1.msra.mxu0 0.0
        %398 = vmatprep.subr.mxu0 0.0
        %399 = vmatpush1.msra.mxu0 0.0
        %400 = vmatprep.subr.mxu0 0.0
        %401 = vmatpush1.msra.mxu0 0.0
        %402 = vmatprep.subr.mxu0 0.0
        %403 = vmatpush1.msra.mxu0 0.0
        %404 = vmatprep.subr.mxu0 0.0
        %405 = vmatpush1.msra.mxu0 0.0
        %406 = vmatprep.subr.mxu0 0.0
        %407 = vmatpush1.msra.mxu0 0.0
        %408 = vmatprep.subr.mxu0 0.0
        %409 = vmatpush1.msra.mxu0 0.0
        %410 = vmatprep.subr.mxu0 0.0
        %411 = vmatpush1.msra.mxu0 0.0
        %412 = vmatprep.subr.mxu0 0.0
        %413 = vmatpush1.msra.mxu0 0.0
        %414 = vmatprep.subr.mxu0 0.0
        %415 = vmatpush1.msra.mxu0 0.0
        %416 = vmatprep.subr.mxu0 0.0
        %417 = vmatpush1.msra.mxu0 0.0
        %418 = vmatprep.subr.mxu0 0.0
        %419 = vmatpush1.msra.mxu0 0.0
        %420 = vmatprep.subr.mxu0 0.0
        %421 = vmatpush1.msra.mxu0 0.0
        %422 = vmatprep.subr.mxu0 0.0
        %423 = vmatpush1.msra.mxu0 0.0
        %424 = vmatprep.subr.mxu0 0.0
        %425 = vmatpush1.msra.mxu0 0.0
        %426 = vmatprep.subr.mxu0 0.0
        %427 = vmatpush1.msra.mxu0 0.0
        %428 = vmatprep.subr.mxu0 0.0
        %429 = vmatpush1.msra.mxu0 0.0
        %430 = vmatprep.mubr.f32.mxu0 0.0
        %431 = vmatmul.mubr.f32.gmra.mrb[0].mxu0 %v362
        %v432 = vpop.f32.mrb[0].mxu0
        %v433 = vadd.f32 %v351, %v432
        %v434 = vpop.f32.mrb[0].mxu0
        %435 = vmatprep.mubr.f32.mxu0 0.0
        %436 = vmatmul.mubr.f32.gmra.mrb[0].mxu0 %v364
        %v437 = vpop.f32.mrb[0].mxu0
        %v438 = vadd.f32 %v355, %v437
        %v439 = vpop.f32.mrb[0].mxu0
        %440 = vdwg.mxu0
        %v441 = vmax.f32 %v433, 0.0
        %v442 = vmax.f32 %v438, 0.0
        %v443 = vld [vmem:[%s246] sm:$0x77]
        %v444 = vld [vmem:[%s246 + $0x8] sm:$0x7]
        %445 = vset.pattern.permute.xlu0 24
        %446 = vperm.xlu0 %445, %v251
        %v447 = vpop.permute.xlu0 %446
        %449 = vset.pattern.permute.xlu0 24
        %450 = vperm.xlu0 %449, %v252
        %v451 = vpop.permute.xlu0 %450
        %453 = vrot.lane.b32.xlu0 %v251, 107
        %v454 = vpop.permute.xlu0 %453
        %455 = vrot.lane.b32.xlu0 %v252, 107
        %v456 = vpop.permute.xlu0 %455
        %v459 = vcombine.high %v443, %v443
        %v460 = vsel %vm263, %v454, 0
        %v462 = vsel %vm263, %v456, 0
        %v464 = vsel %vm268, %v443, 0
        %v466 = vsel %vm268, %v459, 0
        %v468 = vsel %vm268, %v444, 0
        %470 = vmatprep.subr.mxu0 %v466
        %471 = vmatpush1.msra.mxu0 %v464
        %472 = vmatprep.subr.mxu0 0.0
        %473 = vmatpush1.msra.mxu0 0.0
        %474 = vmatprep.subr.mxu0 0.0
        %475 = vmatpush1.msra.mxu0 0.0
        %476 = vmatprep.subr.mxu0 0.0
        %477 = vmatpush1.msra.mxu0 0.0
        %478 = vmatprep.subr.mxu0 0.0
        %479 = vmatpush1.msra.mxu0 0.0
        %480 = vmatprep.subr.mxu0 0.0
        %481 = vmatpush1.msra.mxu0 0.0
        %482 = vmatprep.subr.mxu0 0.0
        %483 = vmatpush1.msra.mxu0 0.0
        %484 = vmatprep.subr.mxu0 0.0
        %485 = vmatpush1.msra.mxu0 0.0
        %486 = vmatprep.subr.mxu0 0.0
        %487 = vmatpush1.msra.mxu0 0.0
        %488 = vmatprep.subr.mxu0 0.0
        %489 = vmatpush1.msra.mxu0 0.0
        %490 = vmatprep.subr.mxu0 0.0
        %491 = vmatpush1.msra.mxu0 0.0
        %492 = vmatprep.subr.mxu0 0.0
        %493 = vmatpush1.msra.mxu0 0.0
        %494 = vmatprep.subr.mxu0 0.0
        %495 = vmatpush1.msra.mxu0 0.0
        %496 = vmatprep.subr.mxu0 0.0
        %497 = vmatpush1.msra.mxu0 0.0
        %498 = vmatprep.subr.mxu0 0.0
        %499 = vmatpush1.msra.mxu0 0.0
        %500 = vmatprep.subr.mxu0 0.0
        %501 = vmatpush1.msra.mxu0 0.0
        %502 = vmatprep.subr.mxu0 0.0
        %503 = vmatpush1.msra.mxu0 0.0
        %504 = vmatprep.subr.mxu0 0.0
        %505 = vmatpush1.msra.mxu0 0.0
        %506 = vmatprep.subr.mxu0 0.0
        %507 = vmatpush1.msra.mxu0 0.0
        %508 = vmatprep.subr.mxu0 0.0
        %509 = vmatpush1.msra.mxu0 0.0
        %510 = vmatprep.subr.mxu0 0.0
        %511 = vmatpush1.msra.mxu0 0.0
        %512 = vmatprep.subr.mxu0 0.0
        %513 = vmatpush1.msra.mxu0 0.0
        %514 = vmatprep.subr.mxu0 0.0
        %515 = vmatpush1.msra.mxu0 0.0
        %516 = vmatprep.subr.mxu0 0.0
        %517 = vmatpush1.msra.mxu0 0.0
        %518 = vmatprep.subr.mxu0 0.0
        %519 = vmatpush1.msra.mxu0 0.0
        %520 = vmatprep.subr.mxu0 0.0
        %521 = vmatpush1.msra.mxu0 0.0
        %522 = vmatprep.subr.mxu0 0.0
        %523 = vmatpush1.msra.mxu0 0.0
        %524 = vmatprep.subr.mxu0 0.0
        %525 = vmatpush1.msra.mxu0 0.0
        %526 = vmatprep.subr.mxu0 0.0
        %527 = vmatpush1.msra.mxu0 0.0
        %528 = vmatprep.subr.mxu0 0.0
        %529 = vmatpush1.msra.mxu0 0.0
        %530 = vmatprep.subr.mxu0 0.0
        %531 = vmatpush1.msra.mxu0 0.0
        %532 = vmatprep.subr.mxu0 0.0
        %533 = vmatpush1.msra.mxu0 0.0
        %534 = vmatprep.mubr.f32.mxu0 0.0
        %535 = vmatmul.mubr.f32.gmra.mrb[0].mxu0 %v460
        %v536 = vpop.f32.mrb[0].mxu0
        %v537 = vadd.f32 %v447, %v536
        %v538 = vpop.f32.mrb[0].mxu0
        %v539 = vadd.f32 %v447, %v538
        %540 = vmatprep.mubr.f32.mxu0 0.0
        %541 = vmatmul.mubr.f32.gmra.mrb[0].mxu0 %v462
        %v542 = vpop.f32.mrb[0].mxu0
        %v543 = vadd.f32 %v451, %v542
        %v544 = vpop.f32.mrb[0].mxu0
        %v545 = vadd.f32 %v451, %v544
        %546 = vdwg.mxu0
        %547 = vmatprep.subr.mxu0 0.0
        %548 = vmatpush1.msra.mxu0 %v468
        %549 = vmatprep.subr.mxu0 0.0
        %550 = vmatpush1.msra.mxu0 0.0
        %551 = vmatprep.subr.mxu0 0.0
        %552 = vmatpush1.msra.mxu0 0.0
        %553 = vmatprep.subr.mxu0 0.0
        %554 = vmatpush1.msra.mxu0 0.0
        %555 = vmatprep.subr.mxu0 0.0
        %556 = vmatpush1.msra.mxu0 0.0
        %557 = vmatprep.subr.mxu0 0.0
        %558 = vmatpush1.msra.mxu0 0.0
        %559 = vmatprep.subr.mxu0 0.0
        %560 = vmatpush1.msra.mxu0 0.0
        %561 = vmatprep.subr.mxu0 0.0
        %562 = vmatpush1.msra.mxu0 0.0
        %563 = vmatprep.subr.mxu0 0.0
        %564 = vmatpush1.msra.mxu0 0.0
        %565 = vmatprep.subr.mxu0 0.0
        %566 = vmatpush1.msra.mxu0 0.0
        %567 = vmatprep.subr.mxu0 0.0
        %568 = vmatpush1.msra.mxu0 0.0
        %569 = vmatprep.subr.mxu0 0.0
        %570 = vmatpush1.msra.mxu0 0.0
        %571 = vmatprep.subr.mxu0 0.0
        %572 = vmatpush1.msra.mxu0 0.0
        %573 = vmatprep.subr.mxu0 0.0
        %574 = vmatpush1.msra.mxu0 0.0
        %575 = vmatprep.subr.mxu0 0.0
        %576 = vmatpush1.msra.mxu0 0.0
        %577 = vmatprep.subr.mxu0 0.0
        %578 = vmatpush1.msra.mxu0 0.0
        %579 = vmatprep.subr.mxu0 0.0
        %580 = vmatpush1.msra.mxu0 0.0
        %581 = vmatprep.subr.mxu0 0.0
        %582 = vmatpush1.msra.mxu0 0.0
        %583 = vmatprep.subr.mxu0 0.0
        %584 = vmatpush1.msra.mxu0 0.0
        %585 = vmatprep.subr.mxu0 0.0
        %586 = vmatpush1.msra.mxu0 0.0
        %587 = vmatprep.subr.mxu0 0.0
        %588 = vmatpush1.msra.mxu0 0.0
        %589 = vmatprep.subr.mxu0 0.0
        %590 = vmatpush1.msra.mxu0 0.0
        %591 = vmatprep.subr.mxu0 0.0
        %592 = vmatpush1.msra.mxu0 0.0
        %593 = vmatprep.subr.mxu0 0.0
        %594 = vmatpush1.msra.mxu0 0.0
        %595 = vmatprep.subr.mxu0 0.0
        %596 = vmatpush1.msra.mxu0 0.0
        %597 = vmatprep.subr.mxu0 0.0
        %598 = vmatpush1.msra.mxu0 0.0
        %599 = vmatprep.subr.mxu0 0.0
        %600 = vmatpush1.msra.mxu0 0.0
        %601 = vmatprep.subr.mxu0 0.0
        %602 = vmatpush1.msra.mxu0 0.0
        %603 = vmatprep.subr.mxu0 0.0
        %604 = vmatpush1.msra.mxu0 0.0
        %605 = vmatprep.subr.mxu0 0.0
        %606 = vmatpush1.msra.mxu0 0.0
        %607 = vmatprep.subr.mxu0 0.0
        %608 = vmatpush1.msra.mxu0 0.0
        %609 = vmatprep.subr.mxu0 0.0
        %610 = vmatpush1.msra.mxu0 0.0
        %611 = vmatprep.mubr.f32.mxu0 0.0
        %612 = vmatmul.mubr.f32.gmra.mrb[0].mxu0 %v460
        %v613 = vpop.f32.mrb[0].mxu0
        %v614 = vadd.f32 %v447, %v613
        %v615 = vpop.f32.mrb[0].mxu0
        %616 = vmatprep.mubr.f32.mxu0 0.0
        %617 = vmatmul.mubr.f32.gmra.mrb[0].mxu0 %v462
        %v618 = vpop.f32.mrb[0].mxu0
        %v619 = vadd.f32 %v451, %v618
        %v620 = vpop.f32.mrb[0].mxu0
        %621 = vdwg.mxu0
        %v622 = vmax.f32 %v537, 0.0
        %v623 = vmax.f32 %v539, 0.0
        %v624 = vmax.f32 %v614, 0.0
        %v625 = vmax.f32 %v543, 0.0
        %v626 = vmax.f32 %v545, 0.0
        %v627 = vmax.f32 %v619, 0.0
        %v628 = vld [vmem:[#allocation4] sm:$0xff]
        %v629 = vld [vmem:[#allocation4 + $0x38] sm:$0xff]
        %631 = vset.pattern.permute.xlu0 41
        %632 = vperm.xlu0 %631, %v628
        %v633 = vpop.permute.xlu0 %632
        %636 = vset.pattern.permute.xlu0 41
        %637 = vperm.xlu0 %636, %v629
        %v638 = vpop.permute.xlu0 %637
        %640 = vrot.lane.b32.xlu0 %v628, 103
        %v641 = vpop.permute.xlu0 %640
        %642 = vrot.lane.b32.xlu0 %v629, 103
        %v643 = vpop.permute.xlu0 %642
        %v644 = vsel %vm361, %v641, 0
        %v646 = vsel %vm361, %v643, 0
        %648 = vmatprep.subr.mxu0 %v623
        %649 = vmatpush1.msra.mxu0 %v622
        %650 = vmatprep.subr.mxu0 %v626
        %651 = vmatpush1.msra.mxu0 %v625
        %652 = vmatprep.subr.mxu0 0.0
        %653 = vmatpush1.msra.mxu0 0.0
        %654 = vmatprep.subr.mxu0 0.0
        %655 = vmatpush1.msra.mxu0 0.0
        %656 = vmatprep.subr.mxu0 0.0
        %657 = vmatpush1.msra.mxu0 0.0
        %658 = vmatprep.subr.mxu0 0.0
        %659 = vmatpush1.msra.mxu0 0.0
        %660 = vmatprep.subr.mxu0 0.0
        %661 = vmatpush1.msra.mxu0 0.0
        %662 = vmatprep.subr.mxu0 0.0
        %663 = vmatpush1.msra.mxu0 0.0
        %664 = vmatprep.subr.mxu0 0.0
        %665 = vmatpush1.msra.mxu0 0.0
        %666 = vmatprep.subr.mxu0 0.0
        %667 = vmatpush1.msra.mxu0 0.0
        %668 = vmatprep.subr.mxu0 0.0
        %669 = vmatpush1.msra.mxu0 0.0
        %670 = vmatprep.subr.mxu0 0.0
        %671 = vmatpush1.msra.mxu0 0.0
        %672 = vmatprep.subr.mxu0 0.0
        %673 = vmatpush1.msra.mxu0 0.0
        %674 = vmatprep.subr.mxu0 0.0
        %675 = vmatpush1.msra.mxu0 0.0
        %676 = vmatprep.subr.mxu0 0.0
        %677 = vmatpush1.msra.mxu0 0.0
        %678 = vmatprep.subr.mxu0 0.0
        %679 = vmatpush1.msra.mxu0 0.0
        %680 = vmatprep.subr.mxu0 0.0
        %681 = vmatpush1.msra.mxu0 0.0
        %682 = vmatprep.subr.mxu0 0.0
        %683 = vmatpush1.msra.mxu0 0.0
        %684 = vmatprep.subr.mxu0 0.0
        %685 = vmatpush1.msra.mxu0 0.0
        %686 = vmatprep.subr.mxu0 0.0
        %687 = vmatpush1.msra.mxu0 0.0
        %688 = vmatprep.subr.mxu0 0.0
        %689 = vmatpush1.msra.mxu0 0.0
        %690 = vmatprep.subr.mxu0 0.0
        %691 = vmatpush1.msra.mxu0 0.0
        %692 = vmatprep.subr.mxu0 0.0
        %693 = vmatpush1.msra.mxu0 0.0
        %694 = vmatprep.subr.mxu0 0.0
        %695 = vmatpush1.msra.mxu0 0.0
        %696 = vmatprep.subr.mxu0 0.0
        %697 = vmatpush1.msra.mxu0 0.0
        %698 = vmatprep.subr.mxu0 0.0
        %699 = vmatpush1.msra.mxu0 0.0
        %700 = vmatprep.subr.mxu0 0.0
        %701 = vmatpush1.msra.mxu0 0.0
        %702 = vmatprep.subr.mxu0 0.0
        %703 = vmatpush1.msra.mxu0 0.0
        %704 = vmatprep.subr.mxu0 0.0
        %705 = vmatpush1.msra.mxu0 0.0
        %706 = vmatprep.subr.mxu0 0.0
        %707 = vmatpush1.msra.mxu0 0.0
        %708 = vmatprep.subr.mxu0 0.0
        %709 = vmatpush1.msra.mxu0 0.0
        %710 = vmatprep.subr.mxu0 0.0
        %711 = vmatpush1.msra.mxu0 0.0
        %712 = vmatprep.mubr.f32.mxu0 0.0
        %713 = vmatmul.mubr.f32.gmra.mrb[0].mxu0 %v644
        %v714 = vpop.f32.mrb[0].mxu0
        %v715 = vadd.f32 %v633, %v714
        %v716 = vpop.f32.mrb[0].mxu0
        %v717 = vadd.f32 %v633, %v716
        %718 = vmatprep.mubr.f32.mxu0 0.0
        %719 = vmatmul.mubr.f32.gmra.mrb[0].mxu0 %v646
        %v720 = vpop.f32.mrb[0].mxu0
        %v721 = vadd.f32 %v638, %v720
        %v722 = vpop.f32.mrb[0].mxu0
        %v723 = vadd.f32 %v638, %v722
        %724 = vdwg.mxu0
        %725 = vmatprep.subr.mxu0 0.0
        %726 = vmatpush1.msra.mxu0 %v624
        %727 = vmatprep.subr.mxu0 0.0
        %728 = vmatpush1.msra.mxu0 %v627
        %729 = vmatprep.subr.mxu0 0.0
        %730 = vmatpush1.msra.mxu0 0.0
        %731 = vmatprep.subr.mxu0 0.0
        %732 = vmatpush1.msra.mxu0 0.0
        %733 = vmatprep.subr.mxu0 0.0
        %734 = vmatpush1.msra.mxu0 0.0
        %735 = vmatprep.subr.mxu0 0.0
        %736 = vmatpush1.msra.mxu0 0.0
        %737 = vmatprep.subr.mxu0 0.0
        %738 = vmatpush1.msra.mxu0 0.0
        %739 = vmatprep.subr.mxu0 0.0
        %740 = vmatpush1.msra.mxu0 0.0
        %741 = vmatprep.subr.mxu0 0.0
        %742 = vmatpush1.msra.mxu0 0.0
        %743 = vmatprep.subr.mxu0 0.0
        %744 = vmatpush1.msra.mxu0 0.0
        %745 = vmatprep.subr.mxu0 0.0
        %746 = vmatpush1.msra.mxu0 0.0
        %747 = vmatprep.subr.mxu0 0.0
        %748 = vmatpush1.msra.mxu0 0.0
        %749 = vmatprep.subr.mxu0 0.0
        %750 = vmatpush1.msra.mxu0 0.0
        %751 = vmatprep.subr.mxu0 0.0
        %752 = vmatpush1.msra.mxu0 0.0
        %753 = vmatprep.subr.mxu0 0.0
        %754 = vmatpush1.msra.mxu0 0.0
        %755 = vmatprep.subr.mxu0 0.0
        %756 = vmatpush1.msra.mxu0 0.0
        %757 = vmatprep.subr.mxu0 0.0
        %758 = vmatpush1.msra.mxu0 0.0
        %759 = vmatprep.subr.mxu0 0.0
        %760 = vmatpush1.msra.mxu0 0.0
        %761 = vmatprep.subr.mxu0 0.0
        %762 = vmatpush1.msra.mxu0 0.0
        %763 = vmatprep.subr.mxu0 0.0
        %764 = vmatpush1.msra.mxu0 0.0
        %765 = vmatprep.subr.mxu0 0.0
        %766 = vmatpush1.msra.mxu0 0.0
        %767 = vmatprep.subr.mxu0 0.0
        %768 = vmatpush1.msra.mxu0 0.0
        %769 = vmatprep.subr.mxu0 0.0
        %770 = vmatpush1.msra.mxu0 0.0
        %771 = vmatprep.subr.mxu0 0.0
        %772 = vmatpush1.msra.mxu0 0.0
        %773 = vmatprep.subr.mxu0 0.0
        %774 = vmatpush1.msra.mxu0 0.0
        %775 = vmatprep.subr.mxu0 0.0
        %776 = vmatpush1.msra.mxu0 0.0
        %777 = vmatprep.subr.mxu0 0.0
        %778 = vmatpush1.msra.mxu0 0.0
        %779 = vmatprep.subr.mxu0 0.0
        %780 = vmatpush1.msra.mxu0 0.0
        %781 = vmatprep.subr.mxu0 0.0
        %782 = vmatpush1.msra.mxu0 0.0
        %783 = vmatprep.subr.mxu0 0.0
        %784 = vmatpush1.msra.mxu0 0.0
        %785 = vmatprep.subr.mxu0 0.0
        %786 = vmatpush1.msra.mxu0 0.0
        %787 = vmatprep.subr.mxu0 0.0
        %788 = vmatpush1.msra.mxu0 0.0
        %789 = vmatprep.mubr.f32.mxu0 0.0
        %790 = vmatmul.mubr.f32.gmra.mrb[0].mxu0 %v644
        %v791 = vpop.f32.mrb[0].mxu0
        %v792 = vadd.f32 %v633, %v791
        %v793 = vpop.f32.mrb[0].mxu0
        %794 = vmatprep.mubr.f32.mxu0 0.0
        %795 = vmatmul.mubr.f32.gmra.mrb[0].mxu0 %v646
        %v796 = vpop.f32.mrb[0].mxu0
        %v797 = vadd.f32 %v638, %v796
        %v798 = vpop.f32.mrb[0].mxu0
        %799 = vdwg.mxu0
        %v800 = vmax.f32 %v715, 0.0
        %v801 = vmax.f32 %v717, 0.0
        %v802 = vmax.f32 %v792, 0.0
        %v803 = vmax.f32 %v721, 0.0
        %v804 = vmax.f32 %v723, 0.0
        %v805 = vmax.f32 %v797, 0.0
        %v806 = vld [vmem:[#allocation7] sm:$0xff]
        %v807 = vld [vmem:[#allocation7 + $0x8] sm:$0xff]
        %v808 = vld [vmem:[#allocation7 + $0x60] sm:$0xff]
        %v809 = vld [vmem:[#allocation7 + $0x68] sm:$0xff]
        %v810 = vld [vmem:[#allocation7 + $0xc0] sm:$0xff]
        %v811 = vld [vmem:[#allocation7 + $0xc8] sm:$0xff]
        %v812 = vld [vmem:[#allocation7 + $0x120] sm:$0xff]
        %v813 = vld [vmem:[#allocation7 + $0x128] sm:$0xff]
        %v814 = vld [vmem:[#allocation7 + $0x180] sm:$0xff]
        %v815 = vld [vmem:[#allocation7 + $0x188] sm:$0xff]
        %v816 = vld [vmem:[#allocation7 + $0x1e0] sm:$0xff]
        %v817 = vld [vmem:[#allocation7 + $0x1e8] sm:$0xff]
        %v818 = vld [vmem:[#allocation7 + $0x240] sm:$0xff]
        %v819 = vld [vmem:[#allocation7 + $0x248] sm:$0xff]
        %v820 = vld [vmem:[#allocation7 + $0x2a0] sm:$0xff]
        %v821 = vld [vmem:[#allocation7 + $0x2a8] sm:$0xff]
        %v822 = vld [vmem:[#allocation7 + $0x300] sm:$0xff]
        %v823 = vld [vmem:[#allocation7 + $0x308] sm:$0xff]
        %v824 = vld [vmem:[#allocation7 + $0x360] sm:$0xff]
        %v825 = vld [vmem:[#allocation7 + $0x368] sm:$0xff]
        %v826 = vld [vmem:[#allocation7 + $0x3c0] sm:$0xff]
        %v827 = vld [vmem:[#allocation7 + $0x3c8] sm:$0xff]
        %v828 = vld [vmem:[#allocation7 + $0x420] sm:$0xff]
        %v829 = vld [vmem:[#allocation7 + $0x428] sm:$0xff]
        %v830 = vld [vmem:[#allocation7 + $0x480] sm:$0xff]
        %v831 = vld [vmem:[#allocation7 + $0x488] sm:$0xff]
        %v832 = vld [vmem:[#allocation7 + $0x4e0] sm:$0xff]
        %v833 = vld [vmem:[#allocation7 + $0x4e8] sm:$0xff]
        %v834 = vld [vmem:[#allocation7 + $0x540] sm:$0xff]
        %v835 = vld [vmem:[#allocation7 + $0x548] sm:$0xff]
        %v836 = vld [vmem:[#allocation7 + $0x5a0] sm:$0xff]
        %v837 = vld [vmem:[#allocation7 + $0x5a8] sm:$0xff]
        %838 = vmatprep.subr.mxu0 %v807
        %839 = vmatpush1.msra.mxu0 %v806
        %840 = vmatprep.subr.mxu0 %v809
        %841 = vmatpush1.msra.mxu0 %v808
        %842 = vmatprep.subr.mxu0 %v811
        %843 = vmatpush1.msra.mxu0 %v810
        %844 = vmatprep.subr.mxu0 %v813
        %845 = vmatpush1.msra.mxu0 %v812
        %846 = vmatprep.subr.mxu0 %v815
        %847 = vmatpush1.msra.mxu0 %v814
        %848 = vmatprep.subr.mxu0 %v817
        %849 = vmatpush1.msra.mxu0 %v816
        %850 = vmatprep.subr.mxu0 %v819
        %851 = vmatpush1.msra.mxu0 %v818
        %852 = vmatprep.subr.mxu0 %v821
        %853 = vmatpush1.msra.mxu0 %v820
        %854 = vmatprep.subr.mxu0 %v823
        %855 = vmatpush1.msra.mxu0 %v822
        %856 = vmatprep.subr.mxu0 %v825
        %857 = vmatpush1.msra.mxu0 %v824
        %858 = vmatprep.subr.mxu0 %v827
        %859 = vmatpush1.msra.mxu0 %v826
        %860 = vmatprep.subr.mxu0 %v829
        %861 = vmatpush1.msra.mxu0 %v828
        %862 = vmatprep.subr.mxu0 %v831
        %863 = vmatpush1.msra.mxu0 %v830
        %864 = vmatprep.subr.mxu0 %v833
        %865 = vmatpush1.msra.mxu0 %v832
        %866 = vmatprep.subr.mxu0 %v835
        %867 = vmatpush1.msra.mxu0 %v834
        %868 = vmatprep.subr.mxu0 %v837
        %869 = vmatpush1.msra.mxu0 %v836
        %870 = vmatprep.subr.mxu0 0.0
        %871 = vmatpush1.msra.mxu0 0.0
        %872 = vmatprep.subr.mxu0 0.0
        %873 = vmatpush1.msra.mxu0 0.0
        %874 = vmatprep.subr.mxu0 0.0
        %875 = vmatpush1.msra.mxu0 0.0
        %876 = vmatprep.subr.mxu0 0.0
        %877 = vmatpush1.msra.mxu0 0.0
        %878 = vmatprep.subr.mxu0 0.0
        %879 = vmatpush1.msra.mxu0 0.0
        %880 = vmatprep.subr.mxu0 0.0
        %881 = vmatpush1.msra.mxu0 0.0
        %882 = vmatprep.subr.mxu0 0.0
        %883 = vmatpush1.msra.mxu0 0.0
        %884 = vmatprep.subr.mxu0 0.0
        %885 = vmatpush1.msra.mxu0 0.0
        %886 = vmatprep.subr.mxu0 0.0
        %887 = vmatpush1.msra.mxu0 0.0
        %888 = vmatprep.subr.mxu0 0.0
        %889 = vmatpush1.msra.mxu0 0.0
        %890 = vmatprep.subr.mxu0 0.0
        %891 = vmatpush1.msra.mxu0 0.0
        %892 = vmatprep.subr.mxu0 0.0
        %893 = vmatpush1.msra.mxu0 0.0
        %894 = vmatprep.subr.mxu0 0.0
        %895 = vmatpush1.msra.mxu0 0.0
        %896 = vmatprep.subr.mxu0 0.0
        %897 = vmatpush1.msra.mxu0 0.0
        %898 = vmatprep.subr.mxu0 0.0
        %899 = vmatpush1.msra.mxu0 0.0
        %900 = vmatprep.subr.mxu0 0.0
        %901 = vmatpush1.msra.mxu0 0.0
        %902 = vmatprep.mubr.f32.mxu0 0.0
        %903 = vmatmul.mubr.f32.gmra.mrb[0].mxu0 %v441
        %v904 = vpop.f32.mrb[0].mxu0
        %v905 = vadd.f32 0.0, %v904
        %v906 = vpop.f32.mrb[0].mxu0
        %v907 = vadd.f32 0.0, %v906
        %908 = vmatprep.mubr.f32.mxu0 0.0
        %909 = vmatmul.mubr.f32.gmra.mrb[0].mxu0 %v442
        %v910 = vpop.f32.mrb[0].mxu0
        %v911 = vadd.f32 0.0, %v910
        %v912 = vpop.f32.mrb[0].mxu0
        %v913 = vadd.f32 0.0, %v912
        %914 = vdwg.mxu0
        %v915 = vld [vmem:[#allocation7 + $0x10] sm:$0xff]
        %v916 = vld [vmem:[#allocation7 + $0x18] sm:$0xff]
        %v917 = vld [vmem:[#allocation7 + $0x70] sm:$0xff]
        %v918 = vld [vmem:[#allocation7 + $0x78] sm:$0xff]
        %v919 = vld [vmem:[#allocation7 + $0xd0] sm:$0xff]
        %v920 = vld [vmem:[#allocation7 + $0xd8] sm:$0xff]
        %v921 = vld [vmem:[#allocation7 + $0x130] sm:$0xff]
        %v922 = vld [vmem:[#allocation7 + $0x138] sm:$0xff]
        %v923 = vld [vmem:[#allocation7 + $0x190] sm:$0xff]
        %v924 = vld [vmem:[#allocation7 + $0x198] sm:$0xff]
        %v925 = vld [vmem:[#allocation7 + $0x1f0] sm:$0xff]
        %v926 = vld [vmem:[#allocation7 + $0x1f8] sm:$0xff]
        %v927 = vld [vmem:[#allocation7 + $0x250] sm:$0xff]
        %v928 = vld [vmem:[#allocation7 + $0x258] sm:$0xff]
        %v929 = vld [vmem:[#allocation7 + $0x2b0] sm:$0xff]
        %v930 = vld [vmem:[#allocation7 + $0x2b8] sm:$0xff]
        %v931 = vld [vmem:[#allocation7 + $0x310] sm:$0xff]
        %v932 = vld [vmem:[#allocation7 + $0x318] sm:$0xff]
        %v933 = vld [vmem:[#allocation7 + $0x370] sm:$0xff]
        %v934 = vld [vmem:[#allocation7 + $0x378] sm:$0xff]
        %v935 = vld [vmem:[#allocation7 + $0x3d0] sm:$0xff]
        %v936 = vld [vmem:[#allocation7 + $0x3d8] sm:$0xff]
        %v937 = vld [vmem:[#allocation7 + $0x430] sm:$0xff]
        %v938 = vld [vmem:[#allocation7 + $0x438] sm:$0xff]
        %v939 = vld [vmem:[#allocation7 + $0x490] sm:$0xff]
        %v940 = vld [vmem:[#allocation7 + $0x498] sm:$0xff]
        %v941 = vld [vmem:[#allocation7 + $0x4f0] sm:$0xff]
        %v942 = vld [vmem:[#allocation7 + $0x4f8] sm:$0xff]
        %v943 = vld [vmem:[#allocation7 + $0x550] sm:$0xff]
        %v944 = vld [vmem:[#allocation7 + $0x558] sm:$0xff]
        %v945 = vld [vmem:[#allocation7 + $0x5b0] sm:$0xff]
        %v946 = vld [vmem:[#allocation7 + $0x5b8] sm:$0xff]
        %947 = vmatprep.subr.mxu0 %v916
        %948 = vmatpush1.msra.mxu0 %v915
        %949 = vmatprep.subr.mxu0 %v918
        %950 = vmatpush1.msra.mxu0 %v917
        %951 = vmatprep.subr.mxu0 %v920
        %952 = vmatpush1.msra.mxu0 %v919
        %953 = vmatprep.subr.mxu0 %v922
        %954 = vmatpush1.msra.mxu0 %v921
        %955 = vmatprep.subr.mxu0 %v924
        %956 = vmatpush1.msra.mxu0 %v923
        %957 = vmatprep.subr.mxu0 %v926
        %958 = vmatpush1.msra.mxu0 %v925
        %959 = vmatprep.subr.mxu0 %v928
        %960 = vmatpush1.msra.mxu0 %v927
        %961 = vmatprep.subr.mxu0 %v930
        %962 = vmatpush1.msra.mxu0 %v929
        %963 = vmatprep.subr.mxu0 %v932
        %964 = vmatpush1.msra.mxu0 %v931
        %965 = vmatprep.subr.mxu0 %v934
        %966 = vmatpush1.msra.mxu0 %v933
        %967 = vmatprep.subr.mxu0 %v936
        %968 = vmatpush1.msra.mxu0 %v935
        %969 = vmatprep.subr.mxu0 %v938
        %970 = vmatpush1.msra.mxu0 %v937
        %971 = vmatprep.subr.mxu0 %v940
        %972 = vmatpush1.msra.mxu0 %v939
        %973 = vmatprep.subr.mxu0 %v942
        %974 = vmatpush1.msra.mxu0 %v941
        %975 = vmatprep.subr.mxu0 %v944
        %976 = vmatpush1.msra.mxu0 %v943
        %977 = vmatprep.subr.mxu0 %v946
        %978 = vmatpush1.msra.mxu0 %v945
        %979 = vmatprep.subr.mxu0 0.0
        %980 = vmatpush1.msra.mxu0 0.0
        %981 = vmatprep.subr.mxu0 0.0
        %982 = vmatpush1.msra.mxu0 0.0
        %983 = vmatprep.subr.mxu0 0.0
        %984 = vmatpush1.msra.mxu0 0.0
        %985 = vmatprep.subr.mxu0 0.0
        %986 = vmatpush1.msra.mxu0 0.0
        %987 = vmatprep.subr.mxu0 0.0
        %988 = vmatpush1.msra.mxu0 0.0
        %989 = vmatprep.subr.mxu0 0.0
        %990 = vmatpush1.msra.mxu0 0.0
        %991 = vmatprep.subr.mxu0 0.0
        %992 = vmatpush1.msra.mxu0 0.0
        %993 = vmatprep.subr.mxu0 0.0
        %994 = vmatpush1.msra.mxu0 0.0
        %995 = vmatprep.subr.mxu0 0.0
        %996 = vmatpush1.msra.mxu0 0.0
        %997 = vmatprep.subr.mxu0 0.0
        %998 = vmatpush1.msra.mxu0 0.0
        %999 = vmatprep.subr.mxu0 0.0
        %1000 = vmatpush1.msra.mxu0 0.0
        %1001 = vmatprep.subr.mxu0 0.0
        %1002 = vmatpush1.msra.mxu0 0.0
        %1003 = vmatprep.subr.mxu0 0.0
        %1004 = vmatpush1.msra.mxu0 0.0
        %1005 = vmatprep.subr.mxu0 0.0
        %1006 = vmatpush1.msra.mxu0 0.0
        %1007 = vmatprep.subr.mxu0 0.0
        %1008 = vmatpush1.msra.mxu0 0.0
        %1009 = vmatprep.subr.mxu0 0.0
        %1010 = vmatpush1.msra.mxu0 0.0
        %1011 = vmatprep.mubr.f32.mxu0 0.0
        %1012 = vmatmul.mubr.f32.gmra.mrb[0].mxu0 %v441
        %v1013 = vpop.f32.mrb[0].mxu0
        %v1014 = vadd.f32 0.0, %v1013
        %v1015 = vpop.f32.mrb[0].mxu0
        %v1016 = vadd.f32 0.0, %v1015
        %1017 = vmatprep.mubr.f32.mxu0 0.0
        %1018 = vmatmul.mubr.f32.gmra.mrb[0].mxu0 %v442
        %v1019 = vpop.f32.mrb[0].mxu0
        %v1020 = vadd.f32 0.0, %v1019
        %v1021 = vpop.f32.mrb[0].mxu0
        %v1022 = vadd.f32 0.0, %v1021
        %1023 = vdwg.mxu0
        %v1024 = vstv %s247
        %v1025 = vmul.f32 %v1024, %v800
        %v1026 = vmul.f32 %v1024, %v801
        %v1027 = vmul.f32 %v1024, %v803
        %v1028 = vmul.f32 %v1024, %v804
        %1029 = vrot.lane.b32.xlu0 %v628, 70
        %v1030 = vpop.permute.xlu0 %1029
        %1031 = vrot.lane.b32.xlu0 %v629, 70
        %v1032 = vpop.permute.xlu0 %1031
        %v1033 = vsel %vm361, %v1030, 0
        %v1035 = vsel %vm361, %v1032, 0
        %1037 = vmatprep.subr.mxu0 %v907
        %1038 = vmatpush1.msra.mxu0 %v905
        %1039 = vmatprep.subr.mxu0 %v913
        %1040 = vmatpush1.msra.mxu0 %v911
        %1041 = vmatprep.subr.mxu0 0.0
        %1042 = vmatpush1.msra.mxu0 0.0
        %1043 = vmatprep.subr.mxu0 0.0
        %1044 = vmatpush1.msra.mxu0 0.0
        %1045 = vmatprep.subr.mxu0 0.0
        %1046 = vmatpush1.msra.mxu0 0.0
        %1047 = vmatprep.subr.mxu0 0.0
        %1048 = vmatpush1.msra.mxu0 0.0
        %1049 = vmatprep.subr.mxu0 0.0
        %1050 = vmatpush1.msra.mxu0 0.0
        %1051 = vmatprep.subr.mxu0 0.0
        %1052 = vmatpush1.msra.mxu0 0.0
        %1053 = vmatprep.subr.mxu0 0.0
        %1054 = vmatpush1.msra.mxu0 0.0
        %1055 = vmatprep.subr.mxu0 0.0
        %1056 = vmatpush1.msra.mxu0 0.0
        %1057 = vmatprep.subr.mxu0 0.0
        %1058 = vmatpush1.msra.mxu0 0.0
        %1059 = vmatprep.subr.mxu0 0.0
        %1060 = vmatpush1.msra.mxu0 0.0
        %1061 = vmatprep.subr.mxu0 0.0
        %1062 = vmatpush1.msra.mxu0 0.0
        %1063 = vmatprep.subr.mxu0 0.0
        %1064 = vmatpush1.msra.mxu0 0.0
        %1065 = vmatprep.subr.mxu0 0.0
        %1066 = vmatpush1.msra.mxu0 0.0
        %1067 = vmatprep.subr.mxu0 0.0
        %1068 = vmatpush1.msra.mxu0 0.0
        %1069 = vmatprep.subr.mxu0 0.0
        %1070 = vmatpush1.msra.mxu0 0.0
        %1071 = vmatprep.subr.mxu0 0.0
        %1072 = vmatpush1.msra.mxu0 0.0
        %1073 = vmatprep.subr.mxu0 0.0
        %1074 = vmatpush1.msra.mxu0 0.0
        %1075 = vmatprep.subr.mxu0 0.0
        %1076 = vmatpush1.msra.mxu0 0.0
        %1077 = vmatprep.subr.mxu0 0.0
        %1078 = vmatpush1.msra.mxu0 0.0
        %1079 = vmatprep.subr.mxu0 0.0
        %1080 = vmatpush1.msra.mxu0 0.0
        %1081 = vmatprep.subr.mxu0 0.0
        %1082 = vmatpush1.msra.mxu0 0.0
        %1083 = vmatprep.subr.mxu0 0.0
        %1084 = vmatpush1.msra.mxu0 0.0
        %1085 = vmatprep.subr.mxu0 0.0
        %1086 = vmatpush1.msra.mxu0 0.0
        %1087 = vmatprep.subr.mxu0 0.0
        %1088 = vmatpush1.msra.mxu0 0.0
        %1089 = vmatprep.subr.mxu0 0.0
        %1090 = vmatpush1.msra.mxu0 0.0
        %1091 = vmatprep.subr.mxu0 0.0
        %1092 = vmatpush1.msra.mxu0 0.0
        %1093 = vmatprep.subr.mxu0 0.0
        %1094 = vmatpush1.msra.mxu0 0.0
        %1095 = vmatprep.subr.mxu0 0.0
        %1096 = vmatpush1.msra.mxu0 0.0
        %1097 = vmatprep.subr.mxu0 0.0
        %1098 = vmatpush1.msra.mxu0 0.0
        %1099 = vmatprep.subr.mxu0 0.0
        %1100 = vmatpush1.msra.mxu0 0.0
        %1101 = vmatprep.mubr.f32.mxu0 0.0
        %1102 = vmatmul.mubr.f32.gmra.mrb[0].mxu0 %v1033
        %v1103 = vpop.f32.mrb[0].mxu0
        %v1104 = vadd.f32 0.0, %v1103
        %v1105 = vpop.f32.mrb[0].mxu0
        %v1106 = vadd.f32 0.0, %v1105
        %1107 = vmatprep.mubr.f32.mxu0 0.0
        %1108 = vmatmul.mubr.f32.gmra.mrb[0].mxu0 %v1035
        %v1109 = vpop.f32.mrb[0].mxu0
        %v1110 = vadd.f32 0.0, %v1109
        %v1111 = vpop.f32.mrb[0].mxu0
        %v1112 = vadd.f32 0.0, %v1111
        %1113 = vdwg.mxu0
        %v1114 = vadd.f32 %v1025, %v1104
        %v1115 = vadd.f32 %v1026, %v1106
        %v1116 = vadd.f32 %v1027, %v1110
        %v1117 = vadd.f32 %v1028, %v1112
        %1118 = vrot.lane.b32.xlu0 %v628, 86
        %v1119 = vpop.permute.xlu0 %1118
        %1120 = vrot.lane.b32.xlu0 %v629, 86
        %v1121 = vpop.permute.xlu0 %1120
        %v1122 = vsel %vm361, %v1119, 0
        %v1124 = vsel %vm361, %v1121, 0
        %1126 = vmatprep.subr.mxu0 %v1016
        %1127 = vmatpush1.msra.mxu0 %v1014
        %1128 = vmatprep.subr.mxu0 %v1022
        %1129 = vmatpush1.msra.mxu0 %v1020
        %1130 = vmatprep.subr.mxu0 0.0
        %1131 = vmatpush1.msra.mxu0 0.0
        %1132 = vmatprep.subr.mxu0 0.0
        %1133 = vmatpush1.msra.mxu0 0.0
        %1134 = vmatprep.subr.mxu0 0.0
        %1135 = vmatpush1.msra.mxu0 0.0
        %1136 = vmatprep.subr.mxu0 0.0
        %1137 = vmatpush1.msra.mxu0 0.0
        %1138 = vmatprep.subr.mxu0 0.0
        %1139 = vmatpush1.msra.mxu0 0.0
        %1140 = vmatprep.subr.mxu0 0.0
        %1141 = vmatpush1.msra.mxu0 0.0
        %1142 = vmatprep.subr.mxu0 0.0
        %1143 = vmatpush1.msra.mxu0 0.0
        %1144 = vmatprep.subr.mxu0 0.0
        %1145 = vmatpush1.msra.mxu0 0.0
        %1146 = vmatprep.subr.mxu0 0.0
        %1147 = vmatpush1.msra.mxu0 0.0
        %1148 = vmatprep.subr.mxu0 0.0
        %1149 = vmatpush1.msra.mxu0 0.0
        %1150 = vmatprep.subr.mxu0 0.0
        %1151 = vmatpush1.msra.mxu0 0.0
        %1152 = vmatprep.subr.mxu0 0.0
        %1153 = vmatpush1.msra.mxu0 0.0
        %1154 = vmatprep.subr.mxu0 0.0
        %1155 = vmatpush1.msra.mxu0 0.0
        %1156 = vmatprep.subr.mxu0 0.0
        %1157 = vmatpush1.msra.mxu0 0.0
        %1158 = vmatprep.subr.mxu0 0.0
        %1159 = vmatpush1.msra.mxu0 0.0
        %1160 = vmatprep.subr.mxu0 0.0
        %1161 = vmatpush1.msra.mxu0 0.0
        %1162 = vmatprep.subr.mxu0 0.0
        %1163 = vmatpush1.msra.mxu0 0.0
        %1164 = vmatprep.subr.mxu0 0.0
        %1165 = vmatpush1.msra.mxu0 0.0
        %1166 = vmatprep.subr.mxu0 0.0
        %1167 = vmatpush1.msra.mxu0 0.0
        %1168 = vmatprep.subr.mxu0 0.0
        %1169 = vmatpush1.msra.mxu0 0.0
        %1170 = vmatprep.subr.mxu0 0.0
        %1171 = vmatpush1.msra.mxu0 0.0
        %1172 = vmatprep.subr.mxu0 0.0
        %1173 = vmatpush1.msra.mxu0 0.0
        %1174 = vmatprep.subr.mxu0 0.0
        %1175 = vmatpush1.msra.mxu0 0.0
        %1176 = vmatprep.subr.mxu0 0.0
        %1177 = vmatpush1.msra.mxu0 0.0
        %1178 = vmatprep.subr.mxu0 0.0
        %1179 = vmatpush1.msra.mxu0 0.0
        %1180 = vmatprep.subr.mxu0 0.0
        %1181 = vmatpush1.msra.mxu0 0.0
        %1182 = vmatprep.subr.mxu0 0.0
        %1183 = vmatpush1.msra.mxu0 0.0
        %1184 = vmatprep.subr.mxu0 0.0
        %1185 = vmatpush1.msra.mxu0 0.0
        %1186 = vmatprep.subr.mxu0 0.0
        %1187 = vmatpush1.msra.mxu0 0.0
        %1188 = vmatprep.subr.mxu0 0.0
        %1189 = vmatpush1.msra.mxu0 0.0
        %1190 = vmatprep.mubr.f32.mxu0 0.0
        %1191 = vmatmul.mubr.f32.gmra.mrb[0].mxu0 %v1122
        %v1192 = vpop.f32.mrb[0].mxu0
        %v1193 = vadd.f32 0.0, %v1192
        %v1194 = vpop.f32.mrb[0].mxu0
        %v1195 = vadd.f32 0.0, %v1194
        %1196 = vmatprep.mubr.f32.mxu0 0.0
        %1197 = vmatmul.mubr.f32.gmra.mrb[0].mxu0 %v1124
        %v1198 = vpop.f32.mrb[0].mxu0
        %v1199 = vadd.f32 0.0, %v1198
        %v1200 = vpop.f32.mrb[0].mxu0
        %v1201 = vadd.f32 0.0, %v1200
        %1202 = vdwg.mxu0
        %v1203 = vadd.f32 %v1114, %v1193
        %v1204 = vadd.f32 %v1115, %v1195
        %v1205 = vadd.f32 %v1116, %v1199
        %v1206 = vadd.f32 %v1117, %v1201
        %v1207 = vld [vmem:[#allocation4] sm:$0xff]
        %v1208 = vld [vmem:[#allocation4 + $0x8] sm:$0xff]
        %v1209 = vld [vmem:[#allocation4 + $0x10] sm:$0xff]
        %v1210 = vld [vmem:[#allocation4 + $0x38] sm:$0xff]
        %v1211 = vld [vmem:[#allocation4 + $0x40] sm:$0xff]
        %v1212 = vld [vmem:[#allocation4 + $0x48] sm:$0xff]
        %1219 = vrot.lane.b32.xlu0 %v1207, 22
        %v1220 = vpop.permute.xlu0 %1219
        %1221 = vrot.lane.b32.xlu0 %v1208, 22
        %v1222 = vpop.permute.xlu0 %1221
        %1223 = vrot.lane.b32.xlu0 %v1209, 22
        %v1224 = vpop.permute.xlu0 %1223
        %1225 = vrot.lane.b32.xlu0 %v1210, 22
        %v1226 = vpop.permute.xlu0 %1225
        %1227 = vrot.lane.b32.xlu0 %v1211, 22
        %v1228 = vpop.permute.xlu0 %1227
        %1229 = vrot.lane.b32.xlu0 %v1212, 22
        %v1230 = vpop.permute.xlu0 %1229
        %vm1231 = vcmask 179200
        %v1232 = vsel %vm1231, %v1220, %v1222
        %v1233 = vsel %vm1231, %v1222, %v1224
        %v1234 = vsel %vm1231, %v1226, %v1228
        %v1235 = vsel %vm1231, %v1228, %v1230
        %v1240 = vadd.f32 %v1203, %v1232
        %v1241 = vadd.f32 %v1204, %v1233
        %v1242 = vadd.f32 %v1205, %v1234
        %v1243 = vadd.f32 %v1206, %v1235
        %v1244 = vmax.f32 %v1240, 0.0
        %v1245 = vmax.f32 %v1241, 0.0
        %v1246 = vmax.f32 %v1242, 0.0
        %v1247 = vmax.f32 %v1243, 0.0
        %v1248 = vld [vmem:[#allocation7 + $0x20] sm:$0xff]
        %v1249 = vld [vmem:[#allocation7 + $0x80] sm:$0xff]
        %v1250 = vld [vmem:[#allocation7 + $0xe0] sm:$0xff]
        %v1251 = vld [vmem:[#allocation7 + $0x140] sm:$0xff]
        %v1252 = vld [vmem:[#allocation7 + $0x1a0] sm:$0xff]
        %v1253 = vld [vmem:[#allocation7 + $0x200] sm:$0xff]
        %v1254 = vld [vmem:[#allocation7 + $0x260] sm:$0xff]
        %v1255 = vld [vmem:[#allocation7 + $0x2c0] sm:$0xff]
        %v1256 = vld [vmem:[#allocation7 + $0x320] sm:$0xff]
        %v1257 = vld [vmem:[#allocation7 + $0x380] sm:$0xff]
        %v1258 = vld [vmem:[#allocation7 + $0x3e0] sm:$0xff]
        %v1259 = vld [vmem:[#allocation7 + $0x440] sm:$0xff]
        %v1260 = vld [vmem:[#allocation7 + $0x4a0] sm:$0xff]
        %v1261 = vld [vmem:[#allocation7 + $0x500] sm:$0xff]
        %v1262 = vld [vmem:[#allocation7 + $0x560] sm:$0xff]
        %v1263 = vld [vmem:[#allocation7 + $0x5c0] sm:$0xff]
        %v1264 = vld [vmem:[#allocation7 + $0x620] sm:$0xff]
        %v1265 = vld [vmem:[#allocation7 + $0x680] sm:$0xff]
        %v1266 = vld [vmem:[#allocation7 + $0x6e0] sm:$0xff]
        %v1267 = vld [vmem:[#allocation7 + $0x740] sm:$0xff]
        %v1268 = vld [vmem:[#allocation7 + $0x7a0] sm:$0xff]
        %v1269 = vld [vmem:[#allocation7 + $0x800] sm:$0xff]
        %v1270 = vld [vmem:[#allocation7 + $0x860] sm:$0xff]
        %v1271 = vld [vmem:[#allocation7 + $0x8c0] sm:$0xff]
        %v1272 = vld [vmem:[#allocation7 + $0x920] sm:$0xff]
        %v1273 = vld [vmem:[#allocation7 + $0x980] sm:$0xff]
        %v1274 = vld [vmem:[#allocation7 + $0x9e0] sm:$0xff]
        %v1275 = vld [vmem:[#allocation7 + $0xa40] sm:$0xff]
        %v1276 = vld [vmem:[#allocation7 + $0xaa0] sm:$0xff]
        %v1277 = vld [vmem:[#allocation7 + $0xb00] sm:$0xff]
        %v1278 = vld [vmem:[#allocation7 + $0xb60] sm:$0xff]
        %v1279 = vld [vmem:[#allocation7 + $0xbc0] sm:$0xff]
        %1280 = vmatprep.subr.mxu0 0.0
        %1281 = vmatpush1.msra.mxu0 %v1248
        %1282 = vmatprep.subr.mxu0 0.0
        %1283 = vmatpush1.msra.mxu0 %v1249
        %1284 = vmatprep.subr.mxu0 0.0
        %1285 = vmatpush1.msra.mxu0 %v1250
        %1286 = vmatprep.subr.mxu0 0.0
        %1287 = vmatpush1.msra.mxu0 %v1251
        %1288 = vmatprep.subr.mxu0 0.0
        %1289 = vmatpush1.msra.mxu0 %v1252
        %1290 = vmatprep.subr.mxu0 0.0
        %1291 = vmatpush1.msra.mxu0 %v1253
        %1292 = vmatprep.subr.mxu0 0.0
        %1293 = vmatpush1.msra.mxu0 %v1254
        %1294 = vmatprep.subr.mxu0 0.0
        %1295 = vmatpush1.msra.mxu0 %v1255
        %1296 = vmatprep.subr.mxu0 0.0
        %1297 = vmatpush1.msra.mxu0 %v1256
        %1298 = vmatprep.subr.mxu0 0.0
        %1299 = vmatpush1.msra.mxu0 %v1257
        %1300 = vmatprep.subr.mxu0 0.0
        %1301 = vmatpush1.msra.mxu0 %v1258
        %1302 = vmatprep.subr.mxu0 0.0
        %1303 = vmatpush1.msra.mxu0 %v1259
        %1304 = vmatprep.subr.mxu0 0.0
        %1305 = vmatpush1.msra.mxu0 %v1260
        %1306 = vmatprep.subr.mxu0 0.0
        %1307 = vmatpush1.msra.mxu0 %v1261
        %1308 = vmatprep.subr.mxu0 0.0
        %1309 = vmatpush1.msra.mxu0 %v1262
        %1310 = vmatprep.subr.mxu0 0.0
        %1311 = vmatpush1.msra.mxu0 %v1263
        %1312 = vmatprep.subr.mxu0 0.0
        %1313 = vmatpush1.msra.mxu0 %v1264
        %1314 = vmatprep.subr.mxu0 0.0
        %1315 = vmatpush1.msra.mxu0 %v1265
        %1316 = vmatprep.subr.mxu0 0.0
        %1317 = vmatpush1.msra.mxu0 %v1266
        %1318 = vmatprep.subr.mxu0 0.0
        %1319 = vmatpush1.msra.mxu0 %v1267
        %1320 = vmatprep.subr.mxu0 0.0
        %1321 = vmatpush1.msra.mxu0 %v1268
        %1322 = vmatprep.subr.mxu0 0.0
        %1323 = vmatpush1.msra.mxu0 %v1269
        %1324 = vmatprep.subr.mxu0 0.0
        %1325 = vmatpush1.msra.mxu0 %v1270
        %1326 = vmatprep.subr.mxu0 0.0
        %1327 = vmatpush1.msra.mxu0 %v1271
        %1328 = vmatprep.subr.mxu0 0.0
        %1329 = vmatpush1.msra.mxu0 %v1272
        %1330 = vmatprep.subr.mxu0 0.0
        %1331 = vmatpush1.msra.mxu0 %v1273
        %1332 = vmatprep.subr.mxu0 0.0
        %1333 = vmatpush1.msra.mxu0 %v1274
        %1334 = vmatprep.subr.mxu0 0.0
        %1335 = vmatpush1.msra.mxu0 %v1275
        %1336 = vmatprep.subr.mxu0 0.0
        %1337 = vmatpush1.msra.mxu0 %v1276
        %1338 = vmatprep.subr.mxu0 0.0
        %1339 = vmatpush1.msra.mxu0 %v1277
        %1340 = vmatprep.subr.mxu0 0.0
        %1341 = vmatpush1.msra.mxu0 %v1278
        %1342 = vmatprep.subr.mxu0 0.0
        %1343 = vmatpush1.msra.mxu0 %v1279
        %1344 = vmatprep.mubr.f32.mxu0 %v1245
        %1345 = vmatmul.mubr.f32.gmra.mrb[0].mxu0 %v1244
        %v1346 = vpop.f32.mrb[0].mxu0
        %v1347 = vadd.f32 0.0, %v1346
        %v1348 = vpop.f32.mrb[0].mxu0
        %1349 = vmatprep.mubr.f32.mxu0 %v1247
        %1350 = vmatmul.mubr.f32.gmra.mrb[0].mxu0 %v1246
        %v1351 = vpop.f32.mrb[0].mxu0
        %v1352 = vadd.f32 0.0, %v1351
        %v1353 = vpop.f32.mrb[0].mxu0
        %1354 = vdwg.mxu0
        %v1355 = vld [vmem:[#allocation7 + $0x28] sm:$0xff]
        %v1356 = vld [vmem:[#allocation7 + $0x88] sm:$0xff]
        %v1357 = vld [vmem:[#allocation7 + $0xe8] sm:$0xff]
        %v1358 = vld [vmem:[#allocation7 + $0x148] sm:$0xff]
        %v1359 = vld [vmem:[#allocation7 + $0x1a8] sm:$0xff]
        %v1360 = vld [vmem:[#allocation7 + $0x208] sm:$0xff]
        %v1361 = vld [vmem:[#allocation7 + $0x268] sm:$0xff]
        %v1362 = vld [vmem:[#allocation7 + $0x2c8] sm:$0xff]
        %v1363 = vld [vmem:[#allocation7 + $0x328] sm:$0xff]
        %v1364 = vld [vmem:[#allocation7 + $0x388] sm:$0xff]
        %v1365 = vld [vmem:[#allocation7 + $0x3e8] sm:$0xff]
        %v1366 = vld [vmem:[#allocation7 + $0x448] sm:$0xff]
        %v1367 = vld [vmem:[#allocation7 + $0x4a8] sm:$0xff]
        %v1368 = vld [vmem:[#allocation7 + $0x508] sm:$0xff]
        %v1369 = vld [vmem:[#allocation7 + $0x568] sm:$0xff]
        %v1370 = vld [vmem:[#allocation7 + $0x5c8] sm:$0xff]
        %v1371 = vld [vmem:[#allocation7 + $0x628] sm:$0xff]
        %v1372 = vld [vmem:[#allocation7 + $0x688] sm:$0xff]
        %v1373 = vld [vmem:[#allocation7 + $0x6e8] sm:$0xff]
        %v1374 = vld [vmem:[#allocation7 + $0x748] sm:$0xff]
        %v1375 = vld [vmem:[#allocation7 + $0x7a8] sm:$0xff]
        %v1376 = vld [vmem:[#allocation7 + $0x808] sm:$0xff]
        %v1377 = vld [vmem:[#allocation7 + $0x868] sm:$0xff]
        %v1378 = vld [vmem:[#allocation7 + $0x8c8] sm:$0xff]
        %v1379 = vld [vmem:[#allocation7 + $0x928] sm:$0xff]
        %v1380 = vld [vmem:[#allocation7 + $0x988] sm:$0xff]
        %v1381 = vld [vmem:[#allocation7 + $0x9e8] sm:$0xff]
        %v1382 = vld [vmem:[#allocation7 + $0xa48] sm:$0xff]
        %v1383 = vld [vmem:[#allocation7 + $0xaa8] sm:$0xff]
        %v1384 = vld [vmem:[#allocation7 + $0xb08] sm:$0xff]
        %v1385 = vld [vmem:[#allocation7 + $0xb68] sm:$0xff]
        %v1386 = vld [vmem:[#allocation7 + $0xbc8] sm:$0xff]
        %1387 = vmatprep.subr.mxu0 0.0
        %1388 = vmatpush1.msra.mxu0 %v1355
        %1389 = vmatprep.subr.mxu0 0.0
        %1390 = vmatpush1.msra.mxu0 %v1356
        %1391 = vmatprep.subr.mxu0 0.0
        %1392 = vmatpush1.msra.mxu0 %v1357
        %1393 = vmatprep.subr.mxu0 0.0
        %1394 = vmatpush1.msra.mxu0 %v1358
        %1395 = vmatprep.subr.mxu0 0.0
        %1396 = vmatpush1.msra.mxu0 %v1359
        %1397 = vmatprep.subr.mxu0 0.0
        %1398 = vmatpush1.msra.mxu0 %v1360
        %1399 = vmatprep.subr.mxu0 0.0
        %1400 = vmatpush1.msra.mxu0 %v1361
        %1401 = vmatprep.subr.mxu0 0.0
        %1402 = vmatpush1.msra.mxu0 %v1362
        %1403 = vmatprep.subr.mxu0 0.0
        %1404 = vmatpush1.msra.mxu0 %v1363
        %1405 = vmatprep.subr.mxu0 0.0
        %1406 = vmatpush1.msra.mxu0 %v1364
        %1407 = vmatprep.subr.mxu0 0.0
        %1408 = vmatpush1.msra.mxu0 %v1365
        %1409 = vmatprep.subr.mxu0 0.0
        %1410 = vmatpush1.msra.mxu0 %v1366
        %1411 = vmatprep.subr.mxu0 0.0
        %1412 = vmatpush1.msra.mxu0 %v1367
        %1413 = vmatprep.subr.mxu0 0.0
        %1414 = vmatpush1.msra.mxu0 %v1368
        %1415 = vmatprep.subr.mxu0 0.0
        %1416 = vmatpush1.msra.mxu0 %v1369
        %1417 = vmatprep.subr.mxu0 0.0
        %1418 = vmatpush1.msra.mxu0 %v1370
        %1419 = vmatprep.subr.mxu0 0.0
        %1420 = vmatpush1.msra.mxu0 %v1371
        %1421 = vmatprep.subr.mxu0 0.0
        %1422 = vmatpush1.msra.mxu0 %v1372
        %1423 = vmatprep.subr.mxu0 0.0
        %1424 = vmatpush1.msra.mxu0 %v1373
        %1425 = vmatprep.subr.mxu0 0.0
        %1426 = vmatpush1.msra.mxu0 %v1374
        %1427 = vmatprep.subr.mxu0 0.0
        %1428 = vmatpush1.msra.mxu0 %v1375
        %1429 = vmatprep.subr.mxu0 0.0
        %1430 = vmatpush1.msra.mxu0 %v1376
        %1431 = vmatprep.subr.mxu0 0.0
        %1432 = vmatpush1.msra.mxu0 %v1377
        %1433 = vmatprep.subr.mxu0 0.0
        %1434 = vmatpush1.msra.mxu0 %v1378
        %1435 = vmatprep.subr.mxu0 0.0
        %1436 = vmatpush1.msra.mxu0 %v1379
        %1437 = vmatprep.subr.mxu0 0.0
        %1438 = vmatpush1.msra.mxu0 %v1380
        %1439 = vmatprep.subr.mxu0 0.0
        %1440 = vmatpush1.msra.mxu0 %v1381
        %1441 = vmatprep.subr.mxu0 0.0
        %1442 = vmatpush1.msra.mxu0 %v1382
        %1443 = vmatprep.subr.mxu0 0.0
        %1444 = vmatpush1.msra.mxu0 %v1383
        %1445 = vmatprep.subr.mxu0 0.0
        %1446 = vmatpush1.msra.mxu0 %v1384
        %1447 = vmatprep.subr.mxu0 0.0
        %1448 = vmatpush1.msra.mxu0 %v1385
        %1449 = vmatprep.subr.mxu0 0.0
        %1450 = vmatpush1.msra.mxu0 %v1386
        %1451 = vmatprep.mubr.f32.mxu0 %v1245
        %1452 = vmatmul.mubr.f32.gmra.mrb[0].mxu0 %v1244
        %v1453 = vpop.f32.mrb[0].mxu0
        %v1454 = vadd.f32 0.0, %v1453
        %v1455 = vpop.f32.mrb[0].mxu0
        %1456 = vmatprep.mubr.f32.mxu0 %v1247
        %1457 = vmatmul.mubr.f32.gmra.mrb[0].mxu0 %v1246
        %v1458 = vpop.f32.mrb[0].mxu0
        %v1459 = vadd.f32 0.0, %v1458
        %v1460 = vpop.f32.mrb[0].mxu0
        %1461 = vdwg.mxu0
        %v1462 = vmul.f32 %v1024, %v802
        %v1463 = vmul.f32 %v1024, %v805
        %1464 = vmatprep.subr.mxu0 0.0
        %1465 = vmatpush1.msra.mxu0 %v1347
        %1466 = vmatprep.subr.mxu0 0.0
        %1467 = vmatpush1.msra.mxu0 %v1352
        %1468 = vmatprep.subr.mxu0 0.0
        %1469 = vmatpush1.msra.mxu0 0.0
        %1470 = vmatprep.subr.mxu0 0.0
        %1471 = vmatpush1.msra.mxu0 0.0
        %1472 = vmatprep.subr.mxu0 0.0
        %1473 = vmatpush1.msra.mxu0 0.0
        %1474 = vmatprep.subr.mxu0 0.0
        %1475 = vmatpush1.msra.mxu0 0.0
        %1476 = vmatprep.subr.mxu0 0.0
        %1477 = vmatpush1.msra.mxu0 0.0
        %1478 = vmatprep.subr.mxu0 0.0
        %1479 = vmatpush1.msra.mxu0 0.0
        %1480 = vmatprep.subr.mxu0 0.0
        %1481 = vmatpush1.msra.mxu0 0.0
        %1482 = vmatprep.subr.mxu0 0.0
        %1483 = vmatpush1.msra.mxu0 0.0
        %1484 = vmatprep.subr.mxu0 0.0
        %1485 = vmatpush1.msra.mxu0 0.0
        %1486 = vmatprep.subr.mxu0 0.0
        %1487 = vmatpush1.msra.mxu0 0.0
        %1488 = vmatprep.subr.mxu0 0.0
        %1489 = vmatpush1.msra.mxu0 0.0
        %1490 = vmatprep.subr.mxu0 0.0
        %1491 = vmatpush1.msra.mxu0 0.0
        %1492 = vmatprep.subr.mxu0 0.0
        %1493 = vmatpush1.msra.mxu0 0.0
        %1494 = vmatprep.subr.mxu0 0.0
        %1495 = vmatpush1.msra.mxu0 0.0
        %1496 = vmatprep.subr.mxu0 0.0
        %1497 = vmatpush1.msra.mxu0 0.0
        %1498 = vmatprep.subr.mxu0 0.0
        %1499 = vmatpush1.msra.mxu0 0.0
        %1500 = vmatprep.subr.mxu0 0.0
        %1501 = vmatpush1.msra.mxu0 0.0
        %1502 = vmatprep.subr.mxu0 0.0
        %1503 = vmatpush1.msra.mxu0 0.0
        %1504 = vmatprep.subr.mxu0 0.0
        %1505 = vmatpush1.msra.mxu0 0.0
        %1506 = vmatprep.subr.mxu0 0.0
        %1507 = vmatpush1.msra.mxu0 0.0
        %1508 = vmatprep.subr.mxu0 0.0
        %1509 = vmatpush1.msra.mxu0 0.0
        %1510 = vmatprep.subr.mxu0 0.0
        %1511 = vmatpush1.msra.mxu0 0.0
        %1512 = vmatprep.subr.mxu0 0.0
        %1513 = vmatpush1.msra.mxu0 0.0
        %1514 = vmatprep.subr.mxu0 0.0
        %1515 = vmatpush1.msra.mxu0 0.0
        %1516 = vmatprep.subr.mxu0 0.0
        %1517 = vmatpush1.msra.mxu0 0.0
        %1518 = vmatprep.subr.mxu0 0.0
        %1519 = vmatpush1.msra.mxu0 0.0
        %1520 = vmatprep.subr.mxu0 0.0
        %1521 = vmatpush1.msra.mxu0 0.0
        %1522 = vmatprep.subr.mxu0 0.0
        %1523 = vmatpush1.msra.mxu0 0.0
        %1524 = vmatprep.subr.mxu0 0.0
        %1525 = vmatpush1.msra.mxu0 0.0
        %1526 = vmatprep.subr.mxu0 0.0
        %1527 = vmatpush1.msra.mxu0 0.0
        %1528 = vmatprep.mubr.f32.mxu0 0.0
        %1529 = vmatmul.mubr.f32.gmra.mrb[0].mxu0 %v1033
        %v1530 = vpop.f32.mrb[0].mxu0
        %v1531 = vadd.f32 0.0, %v1530
        %v1532 = vpop.f32.mrb[0].mxu0
        %1533 = vmatprep.mubr.f32.mxu0 0.0
        %1534 = vmatmul.mubr.f32.gmra.mrb[0].mxu0 %v1035
        %v1535 = vpop.f32.mrb[0].mxu0
        %v1536 = vadd.f32 0.0, %v1535
        %v1537 = vpop.f32.mrb[0].mxu0
        %1538 = vdwg.mxu0
        %v1539 = vadd.f32 %v1462, %v1531
        %v1540 = vadd.f32 %v1463, %v1536
        %1541 = vmatprep.subr.mxu0 0.0
        %1542 = vmatpush1.msra.mxu0 %v1454
        %1543 = vmatprep.subr.mxu0 0.0
        %1544 = vmatpush1.msra.mxu0 %v1459
        %1545 = vmatprep.subr.mxu0 0.0
        %1546 = vmatpush1.msra.mxu0 0.0
        %1547 = vmatprep.subr.mxu0 0.0
        %1548 = vmatpush1.msra.mxu0 0.0
        %1549 = vmatprep.subr.mxu0 0.0
        %1550 = vmatpush1.msra.mxu0 0.0
        %1551 = vmatprep.subr.mxu0 0.0
        %1552 = vmatpush1.msra.mxu0 0.0
        %1553 = vmatprep.subr.mxu0 0.0
        %1554 = vmatpush1.msra.mxu0 0.0
        %1555 = vmatprep.subr.mxu0 0.0
        %1556 = vmatpush1.msra.mxu0 0.0
        %1557 = vmatprep.subr.mxu0 0.0
        %1558 = vmatpush1.msra.mxu0 0.0
        %1559 = vmatprep.subr.mxu0 0.0
        %1560 = vmatpush1.msra.mxu0 0.0
        %1561 = vmatprep.subr.mxu0 0.0
        %1562 = vmatpush1.msra.mxu0 0.0
        %1563 = vmatprep.subr.mxu0 0.0
        %1564 = vmatpush1.msra.mxu0 0.0
        %1565 = vmatprep.subr.mxu0 0.0
        %1566 = vmatpush1.msra.mxu0 0.0
        %1567 = vmatprep.subr.mxu0 0.0
        %1568 = vmatpush1.msra.mxu0 0.0
        %1569 = vmatprep.subr.mxu0 0.0
        %1570 = vmatpush1.msra.mxu0 0.0
        %1571 = vmatprep.subr.mxu0 0.0
        %1572 = vmatpush1.msra.mxu0 0.0
        %1573 = vmatprep.subr.mxu0 0.0
        %1574 = vmatpush1.msra.mxu0 0.0
        %1575 = vmatprep.subr.mxu0 0.0
        %1576 = vmatpush1.msra.mxu0 0.0
        %1577 = vmatprep.subr.mxu0 0.0
        %1578 = vmatpush1.msra.mxu0 0.0
        %1579 = vmatprep.subr.mxu0 0.0
        %1580 = vmatpush1.msra.mxu0 0.0
        %1581 = vmatprep.subr.mxu0 0.0
        %1582 = vmatpush1.msra.mxu0 0.0
        %1583 = vmatprep.subr.mxu0 0.0
        %1584 = vmatpush1.msra.mxu0 0.0
        %1585 = vmatprep.subr.mxu0 0.0
        %1586 = vmatpush1.msra.mxu0 0.0
        %1587 = vmatprep.subr.mxu0 0.0
        %1588 = vmatpush1.msra.mxu0 0.0
        %1589 = vmatprep.subr.mxu0 0.0
        %1590 = vmatpush1.msra.mxu0 0.0
        %1591 = vmatprep.subr.mxu0 0.0
        %1592 = vmatpush1.msra.mxu0 0.0
        %1593 = vmatprep.subr.mxu0 0.0
        %1594 = vmatpush1.msra.mxu0 0.0
        %1595 = vmatprep.subr.mxu0 0.0
        %1596 = vmatpush1.msra.mxu0 0.0
        %1597 = vmatprep.subr.mxu0 0.0
        %1598 = vmatpush1.msra.mxu0 0.0
        %1599 = vmatprep.subr.mxu0 0.0
        %1600 = vmatpush1.msra.mxu0 0.0
        %1601 = vmatprep.subr.mxu0 0.0
        %1602 = vmatpush1.msra.mxu0 0.0
        %1603 = vmatprep.subr.mxu0 0.0
        %1604 = vmatpush1.msra.mxu0 0.0
        %1605 = vmatprep.mubr.f32.mxu0 0.0
        %1606 = vmatmul.mubr.f32.gmra.mrb[0].mxu0 %v1122
        %v1607 = vpop.f32.mrb[0].mxu0
        %v1608 = vadd.f32 0.0, %v1607
        %v1609 = vpop.f32.mrb[0].mxu0
        %1610 = vmatprep.mubr.f32.mxu0 0.0
        %1611 = vmatmul.mubr.f32.gmra.mrb[0].mxu0 %v1124
        %v1612 = vpop.f32.mrb[0].mxu0
        %v1613 = vadd.f32 0.0, %v1612
        %v1614 = vpop.f32.mrb[0].mxu0
        %1615 = vdwg.mxu0
        %v1616 = vadd.f32 %v1539, %v1608
        %v1617 = vadd.f32 %v1540, %v1613
        %v1618 = vld [vmem:[#allocation4 + $0x10] sm:$0xff]
        %v1619 = vld [vmem:[#allocation4 + $0x18] sm:$0xff]
        %v1620 = vld [vmem:[#allocation4 + $0x48] sm:$0xff]
        %v1621 = vld [vmem:[#allocation4 + $0x50] sm:$0xff]
        %1626 = vrot.lane.b32.xlu0 %v1618, 22
        %v1627 = vpop.permute.xlu0 %1626
        %1628 = vrot.lane.b32.xlu0 %v1619, 22
        %v1629 = vpop.permute.xlu0 %1628
        %1630 = vrot.lane.b32.xlu0 %v1620, 22
        %v1631 = vpop.permute.xlu0 %1630
        %1632 = vrot.lane.b32.xlu0 %v1621, 22
        %v1633 = vpop.permute.xlu0 %1632
        %v1634 = vsel %vm1231, %v1627, %v1629
        %v1635 = vsel %vm1231, %v1631, %v1633
        %v1638 = vadd.f32 %v1616, %v1634
        %v1639 = vadd.f32 %v1617, %v1635
        %v1640 = vmax.f32 %v1638, 0.0
        %v1641 = vmax.f32 %v1639, 0.0
        %v1642 = vld [vmem:[#allocation7 + $0x40] sm:$0xff]
        %v1643 = vld [vmem:[#allocation7 + $0x48] sm:$0xff]
        %v1644 = vld [vmem:[#allocation7 + $0xa0] sm:$0xff]
        %v1645 = vld [vmem:[#allocation7 + $0xa8] sm:$0xff]
        %v1646 = vld [vmem:[#allocation7 + $0x100] sm:$0xff]
        %v1647 = vld [vmem:[#allocation7 + $0x108] sm:$0xff]
        %v1648 = vld [vmem:[#allocation7 + $0x160] sm:$0xff]
        %v1649 = vld [vmem:[#allocation7 + $0x168] sm:$0xff]
        %v1650 = vld [vmem:[#allocation7 + $0x1c0] sm:$0xff]
        %v1651 = vld [vmem:[#allocation7 + $0x1c8] sm:$0xff]
        %v1652 = vld [vmem:[#allocation7 + $0x220] sm:$0xff]
        %v1653 = vld [vmem:[#allocation7 + $0x228] sm:$0xff]
        %v1654 = vld [vmem:[#allocation7 + $0x280] sm:$0xff]
        %v1655 = vld [vmem:[#allocation7 + $0x288] sm:$0xff]
        %v1656 = vld [vmem:[#allocation7 + $0x2e0] sm:$0xff]
        %v1657 = vld [vmem:[#allocation7 + $0x2e8] sm:$0xff]
        %vm1658 = vcmask 523264
        %v1660 = vsel %vm1658, %v1640, 0
        %v1663 = vsel %vm1658, %v1641, 0
        %1665 = vmatprep.subr.mxu0 %v1643
        %1666 = vmatpush1.msra.mxu0 %v1642
        %1667 = vmatprep.subr.mxu0 %v1645
        %1668 = vmatpush1.msra.mxu0 %v1644
        %1669 = vmatprep.subr.mxu0 %v1647
        %1670 = vmatpush1.msra.mxu0 %v1646
        %1671 = vmatprep.subr.mxu0 %v1649
        %1672 = vmatpush1.msra.mxu0 %v1648
        %1673 = vmatprep.subr.mxu0 %v1651
        %1674 = vmatpush1.msra.mxu0 %v1650
        %1675 = vmatprep.subr.mxu0 %v1653
        %1676 = vmatpush1.msra.mxu0 %v1652
        %1677 = vmatprep.subr.mxu0 %v1655
        %1678 = vmatpush1.msra.mxu0 %v1654
        %1679 = vmatprep.subr.mxu0 %v1657
        %1680 = vmatpush1.msra.mxu0 %v1656
        %1681 = vmatprep.subr.mxu0 0.0
        %1682 = vmatpush1.msra.mxu0 0.0
        %1683 = vmatprep.subr.mxu0 0.0
        %1684 = vmatpush1.msra.mxu0 0.0
        %1685 = vmatprep.subr.mxu0 0.0
        %1686 = vmatpush1.msra.mxu0 0.0
        %1687 = vmatprep.subr.mxu0 0.0
        %1688 = vmatpush1.msra.mxu0 0.0
        %1689 = vmatprep.subr.mxu0 0.0
        %1690 = vmatpush1.msra.mxu0 0.0
        %1691 = vmatprep.subr.mxu0 0.0
        %1692 = vmatpush1.msra.mxu0 0.0
        %1693 = vmatprep.subr.mxu0 0.0
        %1694 = vmatpush1.msra.mxu0 0.0
        %1695 = vmatprep.subr.mxu0 0.0
        %1696 = vmatpush1.msra.mxu0 0.0
        %1697 = vmatprep.subr.mxu0 0.0
        %1698 = vmatpush1.msra.mxu0 0.0
        %1699 = vmatprep.subr.mxu0 0.0
        %1700 = vmatpush1.msra.mxu0 0.0
        %1701 = vmatprep.subr.mxu0 0.0
        %1702 = vmatpush1.msra.mxu0 0.0
        %1703 = vmatprep.subr.mxu0 0.0
        %1704 = vmatpush1.msra.mxu0 0.0
        %1705 = vmatprep.subr.mxu0 0.0
        %1706 = vmatpush1.msra.mxu0 0.0
        %1707 = vmatprep.subr.mxu0 0.0
        %1708 = vmatpush1.msra.mxu0 0.0
        %1709 = vmatprep.subr.mxu0 0.0
        %1710 = vmatpush1.msra.mxu0 0.0
        %1711 = vmatprep.subr.mxu0 0.0
        %1712 = vmatpush1.msra.mxu0 0.0
        %1713 = vmatprep.subr.mxu0 0.0
        %1714 = vmatpush1.msra.mxu0 0.0
        %1715 = vmatprep.subr.mxu0 0.0
        %1716 = vmatpush1.msra.mxu0 0.0
        %1717 = vmatprep.subr.mxu0 0.0
        %1718 = vmatpush1.msra.mxu0 0.0
        %1719 = vmatprep.subr.mxu0 0.0
        %1720 = vmatpush1.msra.mxu0 0.0
        %1721 = vmatprep.subr.mxu0 0.0
        %1722 = vmatpush1.msra.mxu0 0.0
        %1723 = vmatprep.subr.mxu0 0.0
        %1724 = vmatpush1.msra.mxu0 0.0
        %1725 = vmatprep.subr.mxu0 0.0
        %1726 = vmatpush1.msra.mxu0 0.0
        %1727 = vmatprep.subr.mxu0 0.0
        %1728 = vmatpush1.msra.mxu0 0.0
        %1729 = vmatprep.mubr.f32.mxu0 0.0
        %1730 = vmatmul.mubr.f32.gmra.mrb[0].mxu0 %v1660
        %v1731 = vpop.f32.mrb[0].mxu0
        %v1732 = vadd.f32 0.0, %v1731
        %v1733 = vpop.f32.mrb[0].mxu0
        %v1734 = vadd.f32 0.0, %v1733
        %1735 = vmatprep.mubr.f32.mxu0 0.0
        %1736 = vmatmul.mubr.f32.gmra.mrb[0].mxu0 %v1663
        %v1737 = vpop.f32.mrb[0].mxu0
        %v1738 = vadd.f32 0.0, %v1737
        %v1739 = vpop.f32.mrb[0].mxu0
        %v1740 = vadd.f32 0.0, %v1739
        %1741 = vdwg.mxu0
        %v1742 = vld [vmem:[#allocation7 + $0x50] sm:$0xff]
        %v1743 = vld [vmem:[#allocation7 + $0x58] sm:$0xff]
        %v1744 = vld [vmem:[#allocation7 + $0xb0] sm:$0xff]
        %v1745 = vld [vmem:[#allocation7 + $0xb8] sm:$0xff]
        %v1746 = vld [vmem:[#allocation7 + $0x110] sm:$0xff]
        %v1747 = vld [vmem:[#allocation7 + $0x118] sm:$0xff]
        %v1748 = vld [vmem:[#allocation7 + $0x170] sm:$0xff]
        %v1749 = vld [vmem:[#allocation7 + $0x178] sm:$0xff]
        %v1750 = vld [vmem:[#allocation7 + $0x1d0] sm:$0xff]
        %v1751 = vld [vmem:[#allocation7 + $0x1d8] sm:$0xff]
        %v1752 = vld [vmem:[#allocation7 + $0x230] sm:$0xff]
        %v1753 = vld [vmem:[#allocation7 + $0x238] sm:$0xff]
        %v1754 = vld [vmem:[#allocation7 + $0x290] sm:$0xff]
        %v1755 = vld [vmem:[#allocation7 + $0x298] sm:$0xff]
        %v1756 = vld [vmem:[#allocation7 + $0x2f0] sm:$0xff]
        %v1757 = vld [vmem:[#allocation7 + $0x2f8] sm:$0xff]
        %1758 = vmatprep.subr.mxu0 %v1743
        %1759 = vmatpush1.msra.mxu0 %v1742
        %1760 = vmatprep.subr.mxu0 %v1745
        %1761 = vmatpush1.msra.mxu0 %v1744
        %1762 = vmatprep.subr.mxu0 %v1747
        %1763 = vmatpush1.msra.mxu0 %v1746
        %1764 = vmatprep.subr.mxu0 %v1749
        %1765 = vmatpush1.msra.mxu0 %v1748
        %1766 = vmatprep.subr.mxu0 %v1751
        %1767 = vmatpush1.msra.mxu0 %v1750
        %1768 = vmatprep.subr.mxu0 %v1753
        %1769 = vmatpush1.msra.mxu0 %v1752
        %1770 = vmatprep.subr.mxu0 %v1755
        %1771 = vmatpush1.msra.mxu0 %v1754
        %1772 = vmatprep.subr.mxu0 %v1757
        %1773 = vmatpush1.msra.mxu0 %v1756
        %1774 = vmatprep.subr.mxu0 0.0
        %1775 = vmatpush1.msra.mxu0 0.0
        %1776 = vmatprep.subr.mxu0 0.0
        %1777 = vmatpush1.msra.mxu0 0.0
        %1778 = vmatprep.subr.mxu0 0.0
        %1779 = vmatpush1.msra.mxu0 0.0
        %1780 = vmatprep.subr.mxu0 0.0
        %1781 = vmatpush1.msra.mxu0 0.0
        %1782 = vmatprep.subr.mxu0 0.0
        %1783 = vmatpush1.msra.mxu0 0.0
        %1784 = vmatprep.subr.mxu0 0.0
        %1785 = vmatpush1.msra.mxu0 0.0
        %1786 = vmatprep.subr.mxu0 0.0
        %1787 = vmatpush1.msra.mxu0 0.0
        %1788 = vmatprep.subr.mxu0 0.0
        %1789 = vmatpush1.msra.mxu0 0.0
        %1790 = vmatprep.subr.mxu0 0.0
        %1791 = vmatpush1.msra.mxu0 0.0
        %1792 = vmatprep.subr.mxu0 0.0
        %1793 = vmatpush1.msra.mxu0 0.0
        %1794 = vmatprep.subr.mxu0 0.0
        %1795 = vmatpush1.msra.mxu0 0.0
        %1796 = vmatprep.subr.mxu0 0.0
        %1797 = vmatpush1.msra.mxu0 0.0
        %1798 = vmatprep.subr.mxu0 0.0
        %1799 = vmatpush1.msra.mxu0 0.0
        %1800 = vmatprep.subr.mxu0 0.0
        %1801 = vmatpush1.msra.mxu0 0.0
        %1802 = vmatprep.subr.mxu0 0.0
        %1803 = vmatpush1.msra.mxu0 0.0
        %1804 = vmatprep.subr.mxu0 0.0
        %1805 = vmatpush1.msra.mxu0 0.0
        %1806 = vmatprep.subr.mxu0 0.0
        %1807 = vmatpush1.msra.mxu0 0.0
        %1808 = vmatprep.subr.mxu0 0.0
        %1809 = vmatpush1.msra.mxu0 0.0
        %1810 = vmatprep.subr.mxu0 0.0
        %1811 = vmatpush1.msra.mxu0 0.0
        %1812 = vmatprep.subr.mxu0 0.0
        %1813 = vmatpush1.msra.mxu0 0.0
        %1814 = vmatprep.subr.mxu0 0.0
        %1815 = vmatpush1.msra.mxu0 0.0
        %1816 = vmatprep.subr.mxu0 0.0
        %1817 = vmatpush1.msra.mxu0 0.0
        %1818 = vmatprep.subr.mxu0 0.0
        %1819 = vmatpush1.msra.mxu0 0.0
        %1820 = vmatprep.subr.mxu0 0.0
        %1821 = vmatpush1.msra.mxu0 0.0
        %1822 = vmatprep.mubr.f32.mxu0 0.0
        %1823 = vmatmul.mubr.f32.gmra.mrb[0].mxu0 %v1660
        %v1824 = vpop.f32.mrb[0].mxu0
        %v1825 = vadd.f32 0.0, %v1824
        %v1826 = vpop.f32.mrb[0].mxu0
        %v1827 = vadd.f32 0.0, %v1826
        %1828 = vmatprep.mubr.f32.mxu0 0.0
        %1829 = vmatmul.mubr.f32.gmra.mrb[0].mxu0 %v1663
        %v1830 = vpop.f32.mrb[0].mxu0
        %v1831 = vadd.f32 0.0, %v1830
        %v1832 = vpop.f32.mrb[0].mxu0
        %v1833 = vadd.f32 0.0, %v1832
        %1834 = vdwg.mxu0
        %v1835 = vstv %s248
        %v1836 = vmul.f32 %v1835, %v1244
        %v1837 = vmul.f32 %v1835, %v1245
        %v1838 = vmul.f32 %v1835, %v1246
        %v1839 = vmul.f32 %v1835, %v1247
        %1840 = vrot.lane.b32.xlu0 %v628, 38
        %v1841 = vpop.permute.xlu0 %1840
        %1842 = vrot.lane.b32.xlu0 %v629, 38
        %v1843 = vpop.permute.xlu0 %1842
        %v1844 = vsel %vm361, %v1841, 0
        %v1846 = vsel %vm361, %v1843, 0
        %1848 = vmatprep.subr.mxu0 %v1734
        %1849 = vmatpush1.msra.mxu0 %v1732
        %1850 = vmatprep.subr.mxu0 %v1740
        %1851 = vmatpush1.msra.mxu0 %v1738
        %1852 = vmatprep.subr.mxu0 0.0
        %1853 = vmatpush1.msra.mxu0 0.0
        %1854 = vmatprep.subr.mxu0 0.0
        %1855 = vmatpush1.msra.mxu0 0.0
        %1856 = vmatprep.subr.mxu0 0.0
        %1857 = vmatpush1.msra.mxu0 0.0
        %1858 = vmatprep.subr.mxu0 0.0
        %1859 = vmatpush1.msra.mxu0 0.0
        %1860 = vmatprep.subr.mxu0 0.0
        %1861 = vmatpush1.msra.mxu0 0.0
        %1862 = vmatprep.subr.mxu0 0.0
        %1863 = vmatpush1.msra.mxu0 0.0
        %1864 = vmatprep.subr.mxu0 0.0
        %1865 = vmatpush1.msra.mxu0 0.0
        %1866 = vmatprep.subr.mxu0 0.0
        %1867 = vmatpush1.msra.mxu0 0.0
        %1868 = vmatprep.subr.mxu0 0.0
        %1869 = vmatpush1.msra.mxu0 0.0
        %1870 = vmatprep.subr.mxu0 0.0
        %1871 = vmatpush1.msra.mxu0 0.0
        %1872 = vmatprep.subr.mxu0 0.0
        %1873 = vmatpush1.msra.mxu0 0.0
        %1874 = vmatprep.subr.mxu0 0.0
        %1875 = vmatpush1.msra.mxu0 0.0
        %1876 = vmatprep.subr.mxu0 0.0
        %1877 = vmatpush1.msra.mxu0 0.0
        %1878 = vmatprep.subr.mxu0 0.0
        %1879 = vmatpush1.msra.mxu0 0.0
        %1880 = vmatprep.subr.mxu0 0.0
        %1881 = vmatpush1.msra.mxu0 0.0
        %1882 = vmatprep.subr.mxu0 0.0
        %1883 = vmatpush1.msra.mxu0 0.0
        %1884 = vmatprep.subr.mxu0 0.0
        %1885 = vmatpush1.msra.mxu0 0.0
        %1886 = vmatprep.subr.mxu0 0.0
        %1887 = vmatpush1.msra.mxu0 0.0
        %1888 = vmatprep.subr.mxu0 0.0
        %1889 = vmatpush1.msra.mxu0 0.0
        %1890 = vmatprep.subr.mxu0 0.0
        %1891 = vmatpush1.msra.mxu0 0.0
        %1892 = vmatprep.subr.mxu0 0.0
        %1893 = vmatpush1.msra.mxu0 0.0
        %1894 = vmatprep.subr.mxu0 0.0
        %1895 = vmatpush1.msra.mxu0 0.0
        %1896 = vmatprep.subr.mxu0 0.0
        %1897 = vmatpush1.msra.mxu0 0.0
        %1898 = vmatprep.subr.mxu0 0.0
        %1899 = vmatpush1.msra.mxu0 0.0
        %1900 = vmatprep.subr.mxu0 0.0
        %1901 = vmatpush1.msra.mxu0 0.0
        %1902 = vmatprep.subr.mxu0 0.0
        %1903 = vmatpush1.msra.mxu0 0.0
        %1904 = vmatprep.subr.mxu0 0.0
        %1905 = vmatpush1.msra.mxu0 0.0
        %1906 = vmatprep.subr.mxu0 0.0
        %1907 = vmatpush1.msra.mxu0 0.0
        %1908 = vmatprep.subr.mxu0 0.0
        %1909 = vmatpush1.msra.mxu0 0.0
        %1910 = vmatprep.subr.mxu0 0.0
        %1911 = vmatpush1.msra.mxu0 0.0
        %1912 = vmatprep.mubr.f32.mxu0 0.0
        %1913 = vmatmul.mubr.f32.gmra.mrb[0].mxu0 %v1844
        %v1914 = vpop.f32.mrb[0].mxu0
        %v1915 = vadd.f32 0.0, %v1914
        %v1916 = vpop.f32.mrb[0].mxu0
        %v1917 = vadd.f32 0.0, %v1916
        %1918 = vmatprep.mubr.f32.mxu0 0.0
        %1919 = vmatmul.mubr.f32.gmra.mrb[0].mxu0 %v1846
        %v1920 = vpop.f32.mrb[0].mxu0
        %v1921 = vadd.f32 0.0, %v1920
        %v1922 = vpop.f32.mrb[0].mxu0
        %v1923 = vadd.f32 0.0, %v1922
        %1924 = vdwg.mxu0
        %v1925 = vadd.f32 %v1836, %v1915
        %v1926 = vadd.f32 %v1837, %v1917
        %v1927 = vadd.f32 %v1838, %v1921
        %v1928 = vadd.f32 %v1839, %v1923
        %1929 = vrot.lane.b32.xlu0 %v628, 54
        %v1930 = vpop.permute.xlu0 %1929
        %1931 = vrot.lane.b32.xlu0 %v629, 54
        %v1932 = vpop.permute.xlu0 %1931
        %v1933 = vsel %vm361, %v1930, 0
        %v1935 = vsel %vm361, %v1932, 0
        %1937 = vmatprep.subr.mxu0 %v1827
        %1938 = vmatpush1.msra.mxu0 %v1825
        %1939 = vmatprep.subr.mxu0 %v1833
        %1940 = vmatpush1.msra.mxu0 %v1831
        %1941 = vmatprep.subr.mxu0 0.0
        %1942 = vmatpush1.msra.mxu0 0.0
        %1943 = vmatprep.subr.mxu0 0.0
        %1944 = vmatpush1.msra.mxu0 0.0
        %1945 = vmatprep.subr.mxu0 0.0
        %1946 = vmatpush1.msra.mxu0 0.0
        %1947 = vmatprep.subr.mxu0 0.0
        %1948 = vmatpush1.msra.mxu0 0.0
        %1949 = vmatprep.subr.mxu0 0.0
        %1950 = vmatpush1.msra.mxu0 0.0
        %1951 = vmatprep.subr.mxu0 0.0
        %1952 = vmatpush1.msra.mxu0 0.0
        %1953 = vmatprep.subr.mxu0 0.0
        %1954 = vmatpush1.msra.mxu0 0.0
        %1955 = vmatprep.subr.mxu0 0.0
        %1956 = vmatpush1.msra.mxu0 0.0
        %1957 = vmatprep.subr.mxu0 0.0
        %1958 = vmatpush1.msra.mxu0 0.0
        %1959 = vmatprep.subr.mxu0 0.0
        %1960 = vmatpush1.msra.mxu0 0.0
        %1961 = vmatprep.subr.mxu0 0.0
        %1962 = vmatpush1.msra.mxu0 0.0
        %1963 = vmatprep.subr.mxu0 0.0
        %1964 = vmatpush1.msra.mxu0 0.0
        %1965 = vmatprep.subr.mxu0 0.0
        %1966 = vmatpush1.msra.mxu0 0.0
        %1967 = vmatprep.subr.mxu0 0.0
        %1968 = vmatpush1.msra.mxu0 0.0
        %1969 = vmatprep.subr.mxu0 0.0
        %1970 = vmatpush1.msra.mxu0 0.0
        %1971 = vmatprep.subr.mxu0 0.0
        %1972 = vmatpush1.msra.mxu0 0.0
        %1973 = vmatprep.subr.mxu0 0.0
        %1974 = vmatpush1.msra.mxu0 0.0
        %1975 = vmatprep.subr.mxu0 0.0
        %1976 = vmatpush1.msra.mxu0 0.0
        %1977 = vmatprep.subr.mxu0 0.0
        %1978 = vmatpush1.msra.mxu0 0.0
        %1979 = vmatprep.subr.mxu0 0.0
        %1980 = vmatpush1.msra.mxu0 0.0
        %1981 = vmatprep.subr.mxu0 0.0
        %1982 = vmatpush1.msra.mxu0 0.0
        %1983 = vmatprep.subr.mxu0 0.0
        %1984 = vmatpush1.msra.mxu0 0.0
        %1985 = vmatprep.subr.mxu0 0.0
        %1986 = vmatpush1.msra.mxu0 0.0
        %1987 = vmatprep.subr.mxu0 0.0
        %1988 = vmatpush1.msra.mxu0 0.0
        %1989 = vmatprep.subr.mxu0 0.0
        %1990 = vmatpush1.msra.mxu0 0.0
        %1991 = vmatprep.subr.mxu0 0.0
        %1992 = vmatpush1.msra.mxu0 0.0
        %1993 = vmatprep.subr.mxu0 0.0
        %1994 = vmatpush1.msra.mxu0 0.0
        %1995 = vmatprep.subr.mxu0 0.0
        %1996 = vmatpush1.msra.mxu0 0.0
        %1997 = vmatprep.subr.mxu0 0.0
        %1998 = vmatpush1.msra.mxu0 0.0
        %1999 = vmatprep.subr.mxu0 0.0
        %2000 = vmatpush1.msra.mxu0 0.0
        %2001 = vmatprep.mubr.f32.mxu0 0.0
        %2002 = vmatmul.mubr.f32.gmra.mrb[0].mxu0 %v1933
        %v2003 = vpop.f32.mrb[0].mxu0
        %v2004 = vadd.f32 0.0, %v2003
        %v2005 = vpop.f32.mrb[0].mxu0
        %v2006 = vadd.f32 0.0, %v2005
        %2007 = vmatprep.mubr.f32.mxu0 0.0
        %2008 = vmatmul.mubr.f32.gmra.mrb[0].mxu0 %v1935
        %v2009 = vpop.f32.mrb[0].mxu0
        %v2010 = vadd.f32 0.0, %v2009
        %v2011 = vpop.f32.mrb[0].mxu0
        %v2012 = vadd.f32 0.0, %v2011
        %2013 = vdwg.mxu0
        %v2014 = vadd.f32 %v1925, %v2004
        %v2015 = vadd.f32 %v1926, %v2006
        %v2016 = vadd.f32 %v1927, %v2010
        %v2017 = vadd.f32 %v1928, %v2012
        %v2018 = vld [vmem:[#allocation4 + $0x20] sm:$0xff]
        %v2019 = vld [vmem:[#allocation4 + $0x28] sm:$0xff]
        %v2020 = vld [vmem:[#allocation4 + $0x30] sm:$0xff]
        %v2021 = vld [vmem:[#allocation4 + $0x58] sm:$0xff]
        %v2022 = vld [vmem:[#allocation4 + $0x60] sm:$0xff]
        %v2023 = vld [vmem:[#allocation4 + $0x68] sm:$0xff]
        %2030 = vrot.lane.b32.xlu0 %v2018, 86
        %v2031 = vpop.permute.xlu0 %2030
        %2032 = vrot.lane.b32.xlu0 %v2019, 86
        %v2033 = vpop.permute.xlu0 %2032
        %2034 = vrot.lane.b32.xlu0 %v2020, 86
        %v2035 = vpop.permute.xlu0 %2034
        %2036 = vrot.lane.b32.xlu0 %v2021, 86
        %v2037 = vpop.permute.xlu0 %2036
        %2038 = vrot.lane.b32.xlu0 %v2022, 86
        %v2039 = vpop.permute.xlu0 %2038
        %2040 = vrot.lane.b32.xlu0 %v2023, 86
        %v2041 = vpop.permute.xlu0 %2040
        %vm2042 = vcmask 703488
        %v2043 = vsel %vm2042, %v2031, %v2033
        %v2044 = vsel %vm2042, %v2033, %v2035
        %v2045 = vsel %vm2042, %v2037, %v2039
        %v2046 = vsel %vm2042, %v2039, %v2041
        %v2051 = vadd.f32 %v2014, %v2043
        %v2052 = vadd.f32 %v2015, %v2044
        %v2053 = vadd.f32 %v2016, %v2045
        %v2054 = vadd.f32 %v2017, %v2046
        %v2055 = vmax.f32 %v2051, 0.0
        %v2056 = vmax.f32 %v2052, 0.0
        %v2057 = vmax.f32 %v2053, 0.0
        %v2058 = vmax.f32 %v2054, 0.0
        %v2059 = vld [vmem:[#allocation7 + $0x30] sm:$0xff]
        %v2060 = vld [vmem:[#allocation7 + $0x90] sm:$0xff]
        %v2061 = vld [vmem:[#allocation7 + $0xf0] sm:$0xff]
        %v2062 = vld [vmem:[#allocation7 + $0x150] sm:$0xff]
        %v2063 = vld [vmem:[#allocation7 + $0x1b0] sm:$0xff]
        %v2064 = vld [vmem:[#allocation7 + $0x210] sm:$0xff]
        %v2065 = vld [vmem:[#allocation7 + $0x270] sm:$0xff]
        %v2066 = vld [vmem:[#allocation7 + $0x2d0] sm:$0xff]
        %v2067 = vld [vmem:[#allocation7 + $0x330] sm:$0xff]
        %v2068 = vld [vmem:[#allocation7 + $0x390] sm:$0xff]
        %v2069 = vld [vmem:[#allocation7 + $0x3f0] sm:$0xff]
        %v2070 = vld [vmem:[#allocation7 + $0x450] sm:$0xff]
        %v2071 = vld [vmem:[#allocation7 + $0x4b0] sm:$0xff]
        %v2072 = vld [vmem:[#allocation7 + $0x510] sm:$0xff]
        %v2073 = vld [vmem:[#allocation7 + $0x570] sm:$0xff]
        %v2074 = vld [vmem:[#allocation7 + $0x5d0] sm:$0xff]
        %v2075 = vld [vmem:[#allocation7 + $0x630] sm:$0xff]
        %v2076 = vld [vmem:[#allocation7 + $0x690] sm:$0xff]
        %v2077 = vld [vmem:[#allocation7 + $0x6f0] sm:$0xff]
        %v2078 = vld [vmem:[#allocation7 + $0x750] sm:$0xff]
        %v2079 = vld [vmem:[#allocation7 + $0x7b0] sm:$0xff]
        %v2080 = vld [vmem:[#allocation7 + $0x810] sm:$0xff]
        %v2081 = vld [vmem:[#allocation7 + $0x870] sm:$0xff]
        %v2082 = vld [vmem:[#allocation7 + $0x8d0] sm:$0xff]
        %v2083 = vld [vmem:[#allocation7 + $0x930] sm:$0xff]
        %v2084 = vld [vmem:[#allocation7 + $0x990] sm:$0xff]
        %v2085 = vld [vmem:[#allocation7 + $0x9f0] sm:$0xff]
        %v2086 = vld [vmem:[#allocation7 + $0xa50] sm:$0xff]
        %v2087 = vld [vmem:[#allocation7 + $0xab0] sm:$0xff]
        %v2088 = vld [vmem:[#allocation7 + $0xb10] sm:$0xff]
        %v2089 = vld [vmem:[#allocation7 + $0xb70] sm:$0xff]
        %v2090 = vld [vmem:[#allocation7 + $0xbd0] sm:$0xff]
        %2091 = vmatprep.subr.mxu0 0.0
        %2092 = vmatpush1.msra.mxu0 %v2059
        %2093 = vmatprep.subr.mxu0 0.0
        %2094 = vmatpush1.msra.mxu0 %v2060
        %2095 = vmatprep.subr.mxu0 0.0
        %2096 = vmatpush1.msra.mxu0 %v2061
        %2097 = vmatprep.subr.mxu0 0.0
        %2098 = vmatpush1.msra.mxu0 %v2062
        %2099 = vmatprep.subr.mxu0 0.0
        %2100 = vmatpush1.msra.mxu0 %v2063
        %2101 = vmatprep.subr.mxu0 0.0
        %2102 = vmatpush1.msra.mxu0 %v2064
        %2103 = vmatprep.subr.mxu0 0.0
        %2104 = vmatpush1.msra.mxu0 %v2065
        %2105 = vmatprep.subr.mxu0 0.0
        %2106 = vmatpush1.msra.mxu0 %v2066
        %2107 = vmatprep.subr.mxu0 0.0
        %2108 = vmatpush1.msra.mxu0 %v2067
        %2109 = vmatprep.subr.mxu0 0.0
        %2110 = vmatpush1.msra.mxu0 %v2068
        %2111 = vmatprep.subr.mxu0 0.0
        %2112 = vmatpush1.msra.mxu0 %v2069
        %2113 = vmatprep.subr.mxu0 0.0
        %2114 = vmatpush1.msra.mxu0 %v2070
        %2115 = vmatprep.subr.mxu0 0.0
        %2116 = vmatpush1.msra.mxu0 %v2071
        %2117 = vmatprep.subr.mxu0 0.0
        %2118 = vmatpush1.msra.mxu0 %v2072
        %2119 = vmatprep.subr.mxu0 0.0
        %2120 = vmatpush1.msra.mxu0 %v2073
        %2121 = vmatprep.subr.mxu0 0.0
        %2122 = vmatpush1.msra.mxu0 %v2074
        %2123 = vmatprep.subr.mxu0 0.0
        %2124 = vmatpush1.msra.mxu0 %v2075
        %2125 = vmatprep.subr.mxu0 0.0
        %2126 = vmatpush1.msra.mxu0 %v2076
        %2127 = vmatprep.subr.mxu0 0.0
        %2128 = vmatpush1.msra.mxu0 %v2077
        %2129 = vmatprep.subr.mxu0 0.0
        %2130 = vmatpush1.msra.mxu0 %v2078
        %2131 = vmatprep.subr.mxu0 0.0
        %2132 = vmatpush1.msra.mxu0 %v2079
        %2133 = vmatprep.subr.mxu0 0.0
        %2134 = vmatpush1.msra.mxu0 %v2080
        %2135 = vmatprep.subr.mxu0 0.0
        %2136 = vmatpush1.msra.mxu0 %v2081
        %2137 = vmatprep.subr.mxu0 0.0
        %2138 = vmatpush1.msra.mxu0 %v2082
        %2139 = vmatprep.subr.mxu0 0.0
        %2140 = vmatpush1.msra.mxu0 %v2083
        %2141 = vmatprep.subr.mxu0 0.0
        %2142 = vmatpush1.msra.mxu0 %v2084
        %2143 = vmatprep.subr.mxu0 0.0
        %2144 = vmatpush1.msra.mxu0 %v2085
        %2145 = vmatprep.subr.mxu0 0.0
        %2146 = vmatpush1.msra.mxu0 %v2086
        %2147 = vmatprep.subr.mxu0 0.0
        %2148 = vmatpush1.msra.mxu0 %v2087
        %2149 = vmatprep.subr.mxu0 0.0
        %2150 = vmatpush1.msra.mxu0 %v2088
        %2151 = vmatprep.subr.mxu0 0.0
        %2152 = vmatpush1.msra.mxu0 %v2089
        %2153 = vmatprep.subr.mxu0 0.0
        %2154 = vmatpush1.msra.mxu0 %v2090
        %2155 = vmatprep.mubr.f32.mxu0 %v2056
        %2156 = vmatmul.mubr.f32.gmra.mrb[0].mxu0 %v2055
        %v2157 = vpop.f32.mrb[0].mxu0
        %v2158 = vadd.f32 0.0, %v2157
        %v2159 = vpop.f32.mrb[0].mxu0
        %2160 = vmatprep.mubr.f32.mxu0 %v2058
        %2161 = vmatmul.mubr.f32.gmra.mrb[0].mxu0 %v2057
        %v2162 = vpop.f32.mrb[0].mxu0
        %v2163 = vadd.f32 0.0, %v2162
        %v2164 = vpop.f32.mrb[0].mxu0
        %2165 = vdwg.mxu0
        %v2166 = vld [vmem:[#allocation7 + $0x38] sm:$0xff]
        %v2167 = vld [vmem:[#allocation7 + $0x98] sm:$0xff]
        %v2168 = vld [vmem:[#allocation7 + $0xf8] sm:$0xff]
        %v2169 = vld [vmem:[#allocation7 + $0x158] sm:$0xff]
        %v2170 = vld [vmem:[#allocation7 + $0x1b8] sm:$0xff]
        %v2171 = vld [vmem:[#allocation7 + $0x218] sm:$0xff]
        %v2172 = vld [vmem:[#allocation7 + $0x278] sm:$0xff]
        %v2173 = vld [vmem:[#allocation7 + $0x2d8] sm:$0xff]
        %v2174 = vld [vmem:[#allocation7 + $0x338] sm:$0xff]
        %v2175 = vld [vmem:[#allocation7 + $0x398] sm:$0xff]
        %v2176 = vld [vmem:[#allocation7 + $0x3f8] sm:$0xff]
        %v2177 = vld [vmem:[#allocation7 + $0x458] sm:$0xff]
        %v2178 = vld [vmem:[#allocation7 + $0x4b8] sm:$0xff]
        %v2179 = vld [vmem:[#allocation7 + $0x518] sm:$0xff]
        %v2180 = vld [vmem:[#allocation7 + $0x578] sm:$0xff]
        %v2181 = vld [vmem:[#allocation7 + $0x5d8] sm:$0xff]
        %v2182 = vld [vmem:[#allocation7 + $0x638] sm:$0xff]
        %v2183 = vld [vmem:[#allocation7 + $0x698] sm:$0xff]
        %v2184 = vld [vmem:[#allocation7 + $0x6f8] sm:$0xff]
        %v2185 = vld [vmem:[#allocation7 + $0x758] sm:$0xff]
        %v2186 = vld [vmem:[#allocation7 + $0x7b8] sm:$0xff]
        %v2187 = vld [vmem:[#allocation7 + $0x818] sm:$0xff]
        %v2188 = vld [vmem:[#allocation7 + $0x878] sm:$0xff]
        %v2189 = vld [vmem:[#allocation7 + $0x8d8] sm:$0xff]
        %v2190 = vld [vmem:[#allocation7 + $0x938] sm:$0xff]
        %v2191 = vld [vmem:[#allocation7 + $0x998] sm:$0xff]
        %v2192 = vld [vmem:[#allocation7 + $0x9f8] sm:$0xff]
        %v2193 = vld [vmem:[#allocation7 + $0xa58] sm:$0xff]
        %v2194 = vld [vmem:[#allocation7 + $0xab8] sm:$0xff]
        %v2195 = vld [vmem:[#allocation7 + $0xb18] sm:$0xff]
        %v2196 = vld [vmem:[#allocation7 + $0xb78] sm:$0xff]
        %v2197 = vld [vmem:[#allocation7 + $0xbd8] sm:$0xff]
        %2198 = vmatprep.subr.mxu0 0.0
        %2199 = vmatpush1.msra.mxu0 %v2166
        %2200 = vmatprep.subr.mxu0 0.0
        %2201 = vmatpush1.msra.mxu0 %v2167
        %2202 = vmatprep.subr.mxu0 0.0
        %2203 = vmatpush1.msra.mxu0 %v2168
        %2204 = vmatprep.subr.mxu0 0.0
        %2205 = vmatpush1.msra.mxu0 %v2169
        %2206 = vmatprep.subr.mxu0 0.0
        %2207 = vmatpush1.msra.mxu0 %v2170
        %2208 = vmatprep.subr.mxu0 0.0
        %2209 = vmatpush1.msra.mxu0 %v2171
        %2210 = vmatprep.subr.mxu0 0.0
        %2211 = vmatpush1.msra.mxu0 %v2172
        %2212 = vmatprep.subr.mxu0 0.0
        %2213 = vmatpush1.msra.mxu0 %v2173
        %2214 = vmatprep.subr.mxu0 0.0
        %2215 = vmatpush1.msra.mxu0 %v2174
        %2216 = vmatprep.subr.mxu0 0.0
        %2217 = vmatpush1.msra.mxu0 %v2175
        %2218 = vmatprep.subr.mxu0 0.0
        %2219 = vmatpush1.msra.mxu0 %v2176
        %2220 = vmatprep.subr.mxu0 0.0
        %2221 = vmatpush1.msra.mxu0 %v2177
        %2222 = vmatprep.subr.mxu0 0.0
        %2223 = vmatpush1.msra.mxu0 %v2178
        %2224 = vmatprep.subr.mxu0 0.0
        %2225 = vmatpush1.msra.mxu0 %v2179
        %2226 = vmatprep.subr.mxu0 0.0
        %2227 = vmatpush1.msra.mxu0 %v2180
        %2228 = vmatprep.subr.mxu0 0.0
        %2229 = vmatpush1.msra.mxu0 %v2181
        %2230 = vmatprep.subr.mxu0 0.0
        %2231 = vmatpush1.msra.mxu0 %v2182
        %2232 = vmatprep.subr.mxu0 0.0
        %2233 = vmatpush1.msra.mxu0 %v2183
        %2234 = vmatprep.subr.mxu0 0.0
        %2235 = vmatpush1.msra.mxu0 %v2184
        %2236 = vmatprep.subr.mxu0 0.0
        %2237 = vmatpush1.msra.mxu0 %v2185
        %2238 = vmatprep.subr.mxu0 0.0
        %2239 = vmatpush1.msra.mxu0 %v2186
        %2240 = vmatprep.subr.mxu0 0.0
        %2241 = vmatpush1.msra.mxu0 %v2187
        %2242 = vmatprep.subr.mxu0 0.0
        %2243 = vmatpush1.msra.mxu0 %v2188
        %2244 = vmatprep.subr.mxu0 0.0
        %2245 = vmatpush1.msra.mxu0 %v2189
        %2246 = vmatprep.subr.mxu0 0.0
        %2247 = vmatpush1.msra.mxu0 %v2190
        %2248 = vmatprep.subr.mxu0 0.0
        %2249 = vmatpush1.msra.mxu0 %v2191
        %2250 = vmatprep.subr.mxu0 0.0
        %2251 = vmatpush1.msra.mxu0 %v2192
        %2252 = vmatprep.subr.mxu0 0.0
        %2253 = vmatpush1.msra.mxu0 %v2193
        %2254 = vmatprep.subr.mxu0 0.0
        %2255 = vmatpush1.msra.mxu0 %v2194
        %2256 = vmatprep.subr.mxu0 0.0
        %2257 = vmatpush1.msra.mxu0 %v2195
        %2258 = vmatprep.subr.mxu0 0.0
        %2259 = vmatpush1.msra.mxu0 %v2196
        %2260 = vmatprep.subr.mxu0 0.0
        %2261 = vmatpush1.msra.mxu0 %v2197
        %2262 = vmatprep.mubr.f32.mxu0 %v2056
        %2263 = vmatmul.mubr.f32.gmra.mrb[0].mxu0 %v2055
        %v2264 = vpop.f32.mrb[0].mxu0
        %v2265 = vadd.f32 0.0, %v2264
        %v2266 = vpop.f32.mrb[0].mxu0
        %2267 = vmatprep.mubr.f32.mxu0 %v2058
        %2268 = vmatmul.mubr.f32.gmra.mrb[0].mxu0 %v2057
        %v2269 = vpop.f32.mrb[0].mxu0
        %v2270 = vadd.f32 0.0, %v2269
        %v2271 = vpop.f32.mrb[0].mxu0
        %2272 = vdwg.mxu0
        %v2273 = vmul.f32 %v1835, %v441
        %v2274 = vmul.f32 %v1835, %v442
        %2275 = vmatprep.subr.mxu0 0.0
        %2276 = vmatpush1.msra.mxu0 %v2158
        %2277 = vmatprep.subr.mxu0 0.0
        %2278 = vmatpush1.msra.mxu0 %v2163
        %2279 = vmatprep.subr.mxu0 0.0
        %2280 = vmatpush1.msra.mxu0 0.0
        %2281 = vmatprep.subr.mxu0 0.0
        %2282 = vmatpush1.msra.mxu0 0.0
        %2283 = vmatprep.subr.mxu0 0.0
        %2284 = vmatpush1.msra.mxu0 0.0
        %2285 = vmatprep.subr.mxu0 0.0
        %2286 = vmatpush1.msra.mxu0 0.0
        %2287 = vmatprep.subr.mxu0 0.0
        %2288 = vmatpush1.msra.mxu0 0.0
        %2289 = vmatprep.subr.mxu0 0.0
        %2290 = vmatpush1.msra.mxu0 0.0
        %2291 = vmatprep.subr.mxu0 0.0
        %2292 = vmatpush1.msra.mxu0 0.0
        %2293 = vmatprep.subr.mxu0 0.0
        %2294 = vmatpush1.msra.mxu0 0.0
        %2295 = vmatprep.subr.mxu0 0.0
        %2296 = vmatpush1.msra.mxu0 0.0
        %2297 = vmatprep.subr.mxu0 0.0
        %2298 = vmatpush1.msra.mxu0 0.0
        %2299 = vmatprep.subr.mxu0 0.0
        %2300 = vmatpush1.msra.mxu0 0.0
        %2301 = vmatprep.subr.mxu0 0.0
        %2302 = vmatpush1.msra.mxu0 0.0
        %2303 = vmatprep.subr.mxu0 0.0
        %2304 = vmatpush1.msra.mxu0 0.0
        %2305 = vmatprep.subr.mxu0 0.0
        %2306 = vmatpush1.msra.mxu0 0.0
        %2307 = vmatprep.subr.mxu0 0.0
        %2308 = vmatpush1.msra.mxu0 0.0
        %2309 = vmatprep.subr.mxu0 0.0
        %2310 = vmatpush1.msra.mxu0 0.0
        %2311 = vmatprep.subr.mxu0 0.0
        %2312 = vmatpush1.msra.mxu0 0.0
        %2313 = vmatprep.subr.mxu0 0.0
        %2314 = vmatpush1.msra.mxu0 0.0
        %2315 = vmatprep.subr.mxu0 0.0
        %2316 = vmatpush1.msra.mxu0 0.0
        %2317 = vmatprep.subr.mxu0 0.0
        %2318 = vmatpush1.msra.mxu0 0.0
        %2319 = vmatprep.subr.mxu0 0.0
        %2320 = vmatpush1.msra.mxu0 0.0
        %2321 = vmatprep.subr.mxu0 0.0
        %2322 = vmatpush1.msra.mxu0 0.0
        %2323 = vmatprep.subr.mxu0 0.0
        %2324 = vmatpush1.msra.mxu0 0.0
        %2325 = vmatprep.subr.mxu0 0.0
        %2326 = vmatpush1.msra.mxu0 0.0
        %2327 = vmatprep.subr.mxu0 0.0
        %2328 = vmatpush1.msra.mxu0 0.0
        %2329 = vmatprep.subr.mxu0 0.0
        %2330 = vmatpush1.msra.mxu0 0.0
        %2331 = vmatprep.subr.mxu0 0.0
        %2332 = vmatpush1.msra.mxu0 0.0
        %2333 = vmatprep.subr.mxu0 0.0
        %2334 = vmatpush1.msra.mxu0 0.0
        %2335 = vmatprep.subr.mxu0 0.0
        %2336 = vmatpush1.msra.mxu0 0.0
        %2337 = vmatprep.subr.mxu0 0.0
        %2338 = vmatpush1.msra.mxu0 0.0
        %2339 = vmatprep.mubr.f32.mxu0 0.0
        %2340 = vmatmul.mubr.f32.gmra.mrb[0].mxu0 %v1844
        %v2341 = vpop.f32.mrb[0].mxu0
        %v2342 = vadd.f32 0.0, %v2341
        %v2343 = vpop.f32.mrb[0].mxu0
        %2344 = vmatprep.mubr.f32.mxu0 0.0
        %2345 = vmatmul.mubr.f32.gmra.mrb[0].mxu0 %v1846
        %v2346 = vpop.f32.mrb[0].mxu0
        %v2347 = vadd.f32 0.0, %v2346
        %v2348 = vpop.f32.mrb[0].mxu0
        %2349 = vdwg.mxu0
        %v2350 = vadd.f32 %v2273, %v2342
        %v2351 = vadd.f32 %v2274, %v2347
        %2352 = vmatprep.subr.mxu0 0.0
        %2353 = vmatpush1.msra.mxu0 %v2265
        %2354 = vmatprep.subr.mxu0 0.0
        %2355 = vmatpush1.msra.mxu0 %v2270
        %2356 = vmatprep.subr.mxu0 0.0
        %2357 = vmatpush1.msra.mxu0 0.0
        %2358 = vmatprep.subr.mxu0 0.0
        %2359 = vmatpush1.msra.mxu0 0.0
        %2360 = vmatprep.subr.mxu0 0.0
        %2361 = vmatpush1.msra.mxu0 0.0
        %2362 = vmatprep.subr.mxu0 0.0
        %2363 = vmatpush1.msra.mxu0 0.0
        %2364 = vmatprep.subr.mxu0 0.0
        %2365 = vmatpush1.msra.mxu0 0.0
        %2366 = vmatprep.subr.mxu0 0.0
        %2367 = vmatpush1.msra.mxu0 0.0
        %2368 = vmatprep.subr.mxu0 0.0
        %2369 = vmatpush1.msra.mxu0 0.0
        %2370 = vmatprep.subr.mxu0 0.0
        %2371 = vmatpush1.msra.mxu0 0.0
        %2372 = vmatprep.subr.mxu0 0.0
        %2373 = vmatpush1.msra.mxu0 0.0
        %2374 = vmatprep.subr.mxu0 0.0
        %2375 = vmatpush1.msra.mxu0 0.0
        %2376 = vmatprep.subr.mxu0 0.0
        %2377 = vmatpush1.msra.mxu0 0.0
        %2378 = vmatprep.subr.mxu0 0.0
        %2379 = vmatpush1.msra.mxu0 0.0
        %2380 = vmatprep.subr.mxu0 0.0
        %2381 = vmatpush1.msra.mxu0 0.0
        %2382 = vmatprep.subr.mxu0 0.0
        %2383 = vmatpush1.msra.mxu0 0.0
        %2384 = vmatprep.subr.mxu0 0.0
        %2385 = vmatpush1.msra.mxu0 0.0
        %2386 = vmatprep.subr.mxu0 0.0
        %2387 = vmatpush1.msra.mxu0 0.0
        %2388 = vmatprep.subr.mxu0 0.0
        %2389 = vmatpush1.msra.mxu0 0.0
        %2390 = vmatprep.subr.mxu0 0.0
        %2391 = vmatpush1.msra.mxu0 0.0
        %2392 = vmatprep.subr.mxu0 0.0
        %2393 = vmatpush1.msra.mxu0 0.0
        %2394 = vmatprep.subr.mxu0 0.0
        %2395 = vmatpush1.msra.mxu0 0.0
        %2396 = vmatprep.subr.mxu0 0.0
        %2397 = vmatpush1.msra.mxu0 0.0
        %2398 = vmatprep.subr.mxu0 0.0
        %2399 = vmatpush1.msra.mxu0 0.0
        %2400 = vmatprep.subr.mxu0 0.0
        %2401 = vmatpush1.msra.mxu0 0.0
        %2402 = vmatprep.subr.mxu0 0.0
        %2403 = vmatpush1.msra.mxu0 0.0
        %2404 = vmatprep.subr.mxu0 0.0
        %2405 = vmatpush1.msra.mxu0 0.0
        %2406 = vmatprep.subr.mxu0 0.0
        %2407 = vmatpush1.msra.mxu0 0.0
        %2408 = vmatprep.subr.mxu0 0.0
        %2409 = vmatpush1.msra.mxu0 0.0
        %2410 = vmatprep.subr.mxu0 0.0
        %2411 = vmatpush1.msra.mxu0 0.0
        %2412 = vmatprep.subr.mxu0 0.0
        %2413 = vmatpush1.msra.mxu0 0.0
        %2414 = vmatprep.subr.mxu0 0.0
        %2415 = vmatpush1.msra.mxu0 0.0
        %2416 = vmatprep.mubr.f32.mxu0 0.0
        %2417 = vmatmul.mubr.f32.gmra.mrb[0].mxu0 %v1933
        %v2418 = vpop.f32.mrb[0].mxu0
        %v2419 = vadd.f32 0.0, %v2418
        %v2420 = vpop.f32.mrb[0].mxu0
        %2421 = vmatprep.mubr.f32.mxu0 0.0
        %2422 = vmatmul.mubr.f32.gmra.mrb[0].mxu0 %v1935
        %v2423 = vpop.f32.mrb[0].mxu0
        %v2424 = vadd.f32 0.0, %v2423
        %v2425 = vpop.f32.mrb[0].mxu0
        %2426 = vdwg.mxu0
        %v2427 = vadd.f32 %v2350, %v2419
        %v2428 = vadd.f32 %v2351, %v2424
        %v2429 = vld [vmem:[#allocation4 + $0x18] sm:$0xff]
        %v2430 = vld [vmem:[#allocation4 + $0x20] sm:$0xff]
        %v2431 = vld [vmem:[#allocation4 + $0x50] sm:$0xff]
        %v2432 = vld [vmem:[#allocation4 + $0x58] sm:$0xff]
        %2437 = vrot.lane.b32.xlu0 %v2429, 86
        %v2438 = vpop.permute.xlu0 %2437
        %2439 = vrot.lane.b32.xlu0 %v2430, 86
        %v2440 = vpop.permute.xlu0 %2439
        %2441 = vrot.lane.b32.xlu0 %v2431, 86
        %v2442 = vpop.permute.xlu0 %2441
        %2443 = vrot.lane.b32.xlu0 %v2432, 86
        %v2444 = vpop.permute.xlu0 %2443
        %v2445 = vsel %vm2042, %v2438, %v2440
        %v2446 = vsel %vm2042, %v2442, %v2444
        %v2449 = vadd.f32 %v2427, %v2445
        %v2450 = vadd.f32 %v2428, %v2446
        %v2451 = vmax.f32 %v2449, 0.0
        %v2452 = vmax.f32 %v2450, 0.0
        %2453 = vset.pattern.permute.xlu0 42
        %2454 = vperm.xlu0 %2453, %v2020
        %v2455 = vpop.permute.xlu0 %2454
        %2457 = vset.pattern.permute.xlu0 42
        %2458 = vperm.xlu0 %2457, %v2023
        %v2459 = vpop.permute.xlu0 %2458
        %v2461 = vmul.f32 %v2455, %v2451
        %v2462 = vmul.f32 %v2459, %v2452
        %v2463 = vadd.f32 %v2461, %v2462
        %v2464 = vrot.slane %v2463, 4
        %v2465 = vadd.f32 %v2463, %v2464
        %v2466 = vrot.slane %v2465, 2
        %v2467 = vadd.f32 %v2465, %v2466
        %v2468 = vrot.slane %v2467, 1
        %v2469 = vadd.f32 %v2467, %v2468
        %v2470 = vstv %s249
        %v2471 = vadd.f32 %v2469, %v2470
        %2472 = vst [vmem:[%s237] sm:$0x1] %v2471
        %s2473 = sand.u32 %s127, 1
        %s2474 = scalar_lea.sflag [#allocation6], %s2473
        %s2475 = sand.u32 %s127, 1
        %s2476 = scalar_lea.vmem [#allocation9], %s2475
        // Predicated region
        $region45: #{tpu_custom_call.1} parent=35 // pred_check
          %p2477 = pneg %p137
        $region46: #{tpu_custom_call.1} parent=35 // pred_check_branch
          %2479 = sbr.rel (%p2477) target = $region48
        $region47: #{tpu_custom_call.1} parent=35 // pred_region
          %s2481 = ssub.s32 16, 16
          %2482 = vsyncadd %s2474, %s2481
          %s2483 = smul.addr %s25, 16
          %s2484 = scalar_lea.hbm %s5, %s2483
          %s2486 = sshll.u32 %s2476, 4
          %s2487 = int_to_ptr.vmem [resolvable:$true] %s2486
          %2489 = dma.vmem_to_hbm [thread:$0]  %s2487, 16, %s2484, %s2474
        $region48: #{tpu_custom_call.1} parent=35 // pred_fallthru
          _
      $region36: #{tpu_custom_call.1} parent=5 // pred_fallthru
        _
      %p2490 = scmp.le.s32.totalorder 2, %s20
      // Predicated region
      $region49: #{tpu_custom_call.1} parent=5 // pred_check
        %p2491 = pneg %p2490
      $region50: #{tpu_custom_call.1} parent=5 // pred_check_branch
        %2493 = sbr.rel (%p2491) target = $region52
      $region51: #{tpu_custom_call.1} parent=5 // pred_region
        %s2494 = ssub.s32 %s20, 2
        // Predicated region
        $region53: #{tpu_custom_call.1} parent=51 // pred_check
          %p2495 = pneg %p143
        $region54: #{tpu_custom_call.1} parent=51 // pred_check_branch
          %2497 = sbr.rel (%p2495) target = $region56
        $region55: #{tpu_custom_call.1} parent=51 // pred_region
          %s2498 = sand.u32 %s128, 1
          %s2499 = scalar_lea.sflag [#allocation6], %s2498
          %s2500 = sand.u32 %s128, 1
          %s2501 = scalar_lea.vmem [#allocation9], %s2500
          %2502 = dma.done %s2499, 16
        $region56: #{tpu_custom_call.1} parent=51 // pred_fallthru
          _
      $region52: #{tpu_custom_call.1} parent=5 // pred_fallthru
        _
    $region6: #{tpu_custom_call.1} parent=1 // loop_footer
      %s24 = sadd.s32 1, %s20
    $region7: #{tpu_custom_call.1} parent=1 // loop_footer_branch
      %19 = sbr.rel target = $region3
    $region8: #{tpu_custom_call.1} parent=1 // loop_exit
      _
    %2503 = vsyncpa [#allocation5], 1
    %s2504 = scalar_lea.sflag [#allocation5], 1
    %2505 = vsyncpa %s2504, 1
    %2506 = vsyncpa [#allocation8], 1
    %2507 = vsyncpa [#allocation6], 1
    %s2508 = scalar_lea.sflag [#allocation6], 1
    %2509 = vsyncpa %s2508, 1

</llo_original>
